<compile_context>
chip_gen: v7x
topology: tpu7x:2x2x1
jax: 0.10.0
libtpu: 0.0.40
codegen_flags: <defaults>
</compile_context>

<pallas_src>
import jax
import jax.numpy as jnp
from jax.experimental import pallas as pl
from jax.experimental.pallas import tpu as pltpu

# ---- synthetic generator configuration (small shapes) ----
B        = 2                    # batch_size
H = W    = 16                   # rendered image resolution
N_PIX    = H * W                # 256 pixels/rays  (lane-dense: multiple of 128)
N_STEPS  = 8                    # samples per ray
N_TOT    = N_STEPS * N_PIX      # 2048 ray samples (step-major)
Z_DIM    = 32                   # latent dim
IN_DIM   = 3 + Z_DIM            # (x, y, depth) + latent code
HIDDEN   = 64                   # decoder MLP width
FEAT_DIM = 16                   # rendered feature dim
HEAD_DIM = 1 + FEAT_DIM         # fused sigma + feature head
DT       = 0.1                  # ray step size for alpha compositing


def giraffe_gen_kernel(z_ref, pts_ref, w1z_ref, w2_ref, b2_ref,
                       whead_ref, bhead_ref, wrgb_ref, brgb_ref, out_ref):
    """One batch element per grid step.  All activations are (channels, samples)
    so the sample/pixel axis sits on the 128-lane dimension.

    z_ref    : (1, Z_DIM, 1)        latent code column for this image
    pts_ref  : (HIDDEN, N_TOT)      precomputed pts @ W1[:3] + b1, transposed
    out_ref  : (1, 3, N_PIX)        sigmoid RGB, channel-major, lane-dense
    """
    # Latent (rank-1) contribution to layer 1: (HIDDEN, 1).
    zcol = z_ref[0]                                                 # (Z_DIM, 1)
    z_contrib = jnp.dot(w1z_ref[...], zcol,
                        preferred_element_type=jnp.float32)         # (HIDDEN, 1)

    # Layer 1: shared pts-part + per-image latent bias, broadcast over samples.
    h1 = jnp.maximum(pts_ref[...] + z_contrib, 0.0)                 # (HIDDEN, N_TOT)

    # Layer 2: bf16 MXU matmul, f32 accumulate.
    h2 = jnp.dot(w2_ref[...], h1.astype(jnp.bfloat16),
                 preferred_element_type=jnp.float32) + b2_ref[...]
    h2 = jnp.maximum(h2, 0.0)                                       # (HIDDEN, N_TOT)

    # Fused head: row 0 = sigma, rows 1:HEAD_DIM = feature field (no ReLU).
    head = jnp.dot(whead_ref[...], h2.astype(jnp.bfloat16),
                   preferred_element_type=jnp.float32) + bhead_ref[...]
    # (HEAD_DIM, N_TOT)

    # Lane-dense density / alpha (one exp pass over all samples).
    sigma = jnp.maximum(head[0:1, :], 0.0)                          # (1, N_TOT)
    alpha = 1.0 - jnp.exp(-sigma * DT)                              # (1, N_TOT)

    # Volume rendering: alpha compositing along the ray.  Each step is a
    # 128-aligned lane slice; all elementwise math uses full 128-lane vregs.
    # The (unused) sigma row of `acc` is killed by the zero column in wrgb.
    trans = jnp.ones((1, N_PIX), jnp.float32)
    acc = jnp.zeros((HEAD_DIM, N_PIX), jnp.float32)
    for s in range(N_STEPS):
        lo = s * N_PIX
        a = alpha[:, lo:lo + N_PIX]                                 # (1, N_PIX)
        wgt = trans * a
        acc = acc + wgt * head[:, lo:lo + N_PIX]                    # (HEAD_DIM, N_PIX)
        trans = trans * (1.0 - a)

    # Neural renderer: 1x1 conv (channel matmul) + sigmoid -> RGB, lane-dense.
    rgb = jnp.dot(wrgb_ref[...], acc,
                  preferred_element_type=jnp.float32) + brgb_ref[...]
    out_ref[0] = jax.nn.sigmoid(rgb)                                # (3, N_PIX)


def _const_spec(shape):
    # whole-array block, constant over the batch grid
    return pl.BlockSpec(shape, lambda b: tuple(0 for _ in shape))


def giraffe_forward(batch_size, params, key):
    """GIRAFFE.forward(batch_size): run the generator, return NCHW image."""
    assert batch_size == B
    (w1, b1, w2, b2, wsig, bsig, wfeat, bfeat, wrgb, brgb) = params

    # ---- batch-invariant glue: ray-sample coordinates (step-major) ----
    u = (jnp.arange(W, dtype=jnp.float32) / (W - 1)) * 2.0 - 1.0
    v = (jnp.arange(H, dtype=jnp.float32) / (H - 1)) * 2.0 - 1.0
    vv, uu = jnp.meshgrid(v, u, indexing="ij")                      # (H, W)
    pix = jnp.stack([uu.reshape(-1), vv.reshape(-1)], axis=-1)      # (N_PIX, 2)
    depth = (jnp.arange(N_STEPS, dtype=jnp.float32) + 0.5) / N_STEPS
    pts = jnp.concatenate(
        [jnp.broadcast_to(pix[None], (N_STEPS, N_PIX, 2)),
         jnp.broadcast_to(depth[:, None, None], (N_STEPS, N_PIX, 1))],
        axis=-1).reshape(N_TOT, 3)

    # Batch-invariant part of layer 1 (pts @ W1[:3] + b1), precomputed once and
    # transposed so samples sit on lanes inside the kernel.
    pts_partT = (pts @ w1[:3] + b1).T.astype(jnp.float32)           # (HIDDEN, N_TOT)

    # Per-image latent codes as (Z_DIM, 1) columns -- only Z_DIM floats per
    # batch element cross HBM->VMEM (no broadcast replication).
    z = jax.random.normal(key, (batch_size, Z_DIM), dtype=jnp.float32)
    zcol = z[:, :, None]                                            # (B, Z_DIM, 1)

    # Pre-transposed / fused weights; big matmul operands in bf16.
    w1zT   = w1[3:].T.astype(jnp.float32)                           # (HIDDEN, Z_DIM)
    w2T    = w2.T.astype(jnp.bfloat16)                              # (HIDDEN, HIDDEN)
    b2col  = b2.T                                                   # (HIDDEN, 1)
    wheadT = jnp.concatenate([wsig, wfeat], axis=1).T.astype(jnp.bfloat16)  # (HEAD_DIM, HIDDEN)
    bheadc = jnp.concatenate([bsig, bfeat], axis=1).T               # (HEAD_DIM, 1)
    wrgbT  = jnp.concatenate([jnp.zeros((1, 3), jnp.float32), wrgb],
                             axis=0).T                              # (3, HEAD_DIM)
    brgbc  = brgb.T                                                 # (3, 1)

    out = pl.pallas_call(
        giraffe_gen_kernel,
        out_shape=jax.ShapeDtypeStruct((batch_size, 3, N_PIX), jnp.float32),
        grid_spec=pltpu.PrefetchScalarGridSpec(
            num_scalar_prefetch=0,
            grid=(batch_size,),
            in_specs=[
                pl.BlockSpec((1, Z_DIM, 1), lambda b: (b, 0, 0)),   # z column
                _const_spec((HIDDEN, N_TOT)),                        # pts_partT
                _const_spec((HIDDEN, Z_DIM)),                        # w1zT
                _const_spec((HIDDEN, HIDDEN)),                       # w2T (bf16)
                _const_spec((HIDDEN, 1)),                            # b2col
                _const_spec((HEAD_DIM, HIDDEN)),                     # wheadT (bf16)
                _const_spec((HEAD_DIM, 1)),                          # bheadc
                _const_spec((3, HEAD_DIM)),                          # wrgbT
                _const_spec((3, 1)),                                 # brgbc
            ],
            out_specs=pl.BlockSpec((1, 3, N_PIX), lambda b: (b, 0, 0)),
        ),
        compiler_params=pltpu.CompilerParams(
            dimension_semantics=("parallel",)),                      # v7x megacore
    )(zcol, pts_partT, w1zT, w2T, b2col, wheadT, bheadc, wrgbT, brgbc)

    # (B, 3, N_PIX) is already channel-major -> just fold pixels to (H, W).
    return out.reshape(batch_size, 3, H, W)


def init_params(key):
    ks = jax.random.split(key, 5)
    def dense(k, fan_in, fan_out):
        scale = 1.0 / jnp.sqrt(jnp.float32(fan_in))
        w = jax.random.normal(k, (fan_in, fan_out), jnp.float32) * scale
        b = jnp.zeros((1, fan_out), jnp.float32)
        return w, b
    w1, b1 = dense(ks[0], IN_DIM, HIDDEN)
    w2, b2 = dense(ks[1], HIDDEN, HIDDEN)
    wsig, bsig = dense(ks[2], HIDDEN, 1)
    wfeat, bfeat = dense(ks[3], HIDDEN, FEAT_DIM)
    wrgb, brgb = dense(ks[4], FEAT_DIM, 3)
    return (w1, b1, w2, b2, wsig, bsig, wfeat, bfeat, wrgb, brgb)


# TODO(synk): the real GIRAFFE generator composes per-object feature fields and
# a multi-layer upsampling neural renderer; this script implements a single
# decoder field + 1x1-conv renderer as the representative Pallas hot path.

if __name__ == "__main__":
    root = jax.random.PRNGKey(0)
    pkey, zkey = jax.random.split(root)
    params = init_params(pkey)

    # GIRAFFE.forward(batch_size) -> generator(batch_size=batch_size)
    img = giraffe_forward(B, params, zkey)
    jax.block_until_ready(img)

    assert img.shape == (B, 3, H, W), img.shape
    assert img.dtype == jnp.float32
    assert bool(jnp.all(jnp.isfinite(img)))
    print("KERNEL_OK")
</pallas_src>

<mosaic_0001>
module attributes {stable_mosaic.version = 11 : i64} {
  func.func @giraffe_gen_kernel(%arg0: i32, %arg1: memref<1x32x1xf32, #tpu.memory_space<vmem>>, %arg2: memref<64x2048xf32, #tpu.memory_space<vmem>>, %arg3: memref<64x32xf32, #tpu.memory_space<vmem>>, %arg4: memref<64x64xbf16, #tpu.memory_space<vmem>>, %arg5: memref<64x1xf32, #tpu.memory_space<vmem>>, %arg6: memref<17x64xbf16, #tpu.memory_space<vmem>>, %arg7: memref<17x1xf32, #tpu.memory_space<vmem>>, %arg8: memref<3x17xf32, #tpu.memory_space<vmem>>, %arg9: memref<3x1xf32, #tpu.memory_space<vmem>>, %arg10: memref<1x3x256xf32, #tpu.memory_space<vmem>>) attributes {dimension_semantics = [#tpu.dimension_semantics<parallel>], iteration_bounds = array<i64: 2>, scalar_prefetch = 0 : i64, scratch_operands = 0 : i64, tpu.core_type = #tpu.core_type<tc>, window_params = [{transform_indices = @transform_0, window_bounds = array<i64: 1, 32, 1>}, {pipeline_mode = #tpu.pipeline_mode<synchronous>, transform_indices = @transform_1, window_bounds = array<i64: 64, 2048>}, {pipeline_mode = #tpu.pipeline_mode<synchronous>, transform_indices = @transform_2, window_bounds = array<i64: 64, 32>}, {pipeline_mode = #tpu.pipeline_mode<synchronous>, transform_indices = @transform_3, window_bounds = array<i64: 64, 64>}, {pipeline_mode = #tpu.pipeline_mode<synchronous>, transform_indices = @transform_4, window_bounds = array<i64: 64, 1>}, {pipeline_mode = #tpu.pipeline_mode<synchronous>, transform_indices = @transform_5, window_bounds = array<i64: 17, 64>}, {pipeline_mode = #tpu.pipeline_mode<synchronous>, transform_indices = @transform_6, window_bounds = array<i64: 17, 1>}, {pipeline_mode = #tpu.pipeline_mode<synchronous>, transform_indices = @transform_7, window_bounds = array<i64: 3, 17>}, {pipeline_mode = #tpu.pipeline_mode<synchronous>, transform_indices = @transform_8, window_bounds = array<i64: 3, 1>}, {transform_indices = @transform_9, window_bounds = array<i64: 1, 3, 256>}]} {
    %c0 = arith.constant 0 : index
    %c0_0 = arith.constant 0 : index
    %c0_1 = arith.constant 0 : index
    %0 = vector.load %arg1[%c0, %c0_0, %c0_1] : memref<1x32x1xf32, #tpu.memory_space<vmem>>, vector<1x32x1xf32>
    %1 = vector.shape_cast %0 : vector<1x32x1xf32> to vector<32x1xf32>
    %c0_2 = arith.constant 0 : index
    %c0_3 = arith.constant 0 : index
    %2 = vector.load %arg3[%c0_2, %c0_3] : memref<64x32xf32, #tpu.memory_space<vmem>>, vector<64x32xf32>
    %cst = arith.constant dense<0.000000e+00> : vector<64x1xf32>
    %3 = tpu.matmul %2, %1, %cst {dimension_numbers = #tpu.dot_dimension_numbers<[1], [0], [0], [1], [0, 0, 1, 1], [], []>} : vector<64x32xf32>, vector<32x1xf32>, vector<64x1xf32> -> vector<64x1xf32>
    %c0_4 = arith.constant 0 : index
    %c0_5 = arith.constant 0 : index
    %4 = vector.load %arg2[%c0_4, %c0_5] : memref<64x2048xf32, #tpu.memory_space<vmem>>, vector<64x2048xf32>
    %5 = vector.broadcast %3 : vector<64x1xf32> to vector<64x2048xf32>
    %6 = arith.addf %4, %5 : vector<64x2048xf32>
    %cst_6 = arith.constant 0.000000e+00 : f32
    %7 = vector.broadcast %cst_6 : f32 to vector<64x2048xf32>
    %8 = arith.maximumf %6, %7 : vector<64x2048xf32>
    %c0_7 = arith.constant 0 : index
    %c0_8 = arith.constant 0 : index
    %9 = vector.load %arg4[%c0_7, %c0_8] : memref<64x64xbf16, #tpu.memory_space<vmem>>, vector<64x64xbf16>
    %10 = arith.truncf %8 : vector<64x2048xf32> to vector<64x2048xbf16>
    %cst_9 = arith.constant dense<0.000000e+00> : vector<64x2048xf32>
    %11 = tpu.matmul %9, %10, %cst_9 {dimension_numbers = #tpu.dot_dimension_numbers<[1], [0], [0], [1], [0, 0, 1, 1], [], []>} : vector<64x64xbf16>, vector<64x2048xbf16>, vector<64x2048xf32> -> vector<64x2048xf32>
    %c0_10 = arith.constant 0 : index
    %c0_11 = arith.constant 0 : index
    %12 = vector.load %arg5[%c0_10, %c0_11] : memref<64x1xf32, #tpu.memory_space<vmem>>, vector<64x1xf32>
    %13 = vector.broadcast %12 : vector<64x1xf32> to vector<64x2048xf32>
    %14 = arith.addf %11, %13 : vector<64x2048xf32>
    %cst_12 = arith.constant 0.000000e+00 : f32
    %15 = vector.broadcast %cst_12 : f32 to vector<64x2048xf32>
    %16 = arith.maximumf %14, %15 : vector<64x2048xf32>
    %c0_13 = arith.constant 0 : index
    %c0_14 = arith.constant 0 : index
    %17 = vector.load %arg6[%c0_13, %c0_14] : memref<17x64xbf16, #tpu.memory_space<vmem>>, vector<17x64xbf16>
    %18 = arith.truncf %16 : vector<64x2048xf32> to vector<64x2048xbf16>
    %cst_15 = arith.constant dense<0.000000e+00> : vector<17x2048xf32>
    %19 = tpu.matmul %17, %18, %cst_15 {dimension_numbers = #tpu.dot_dimension_numbers<[1], [0], [0], [1], [0, 0, 1, 1], [], []>} : vector<17x64xbf16>, vector<64x2048xbf16>, vector<17x2048xf32> -> vector<17x2048xf32>
    %c0_16 = arith.constant 0 : index
    %c0_17 = arith.constant 0 : index
    %20 = vector.load %arg7[%c0_16, %c0_17] : memref<17x1xf32, #tpu.memory_space<vmem>>, vector<17x1xf32>
    %21 = vector.broadcast %20 : vector<17x1xf32> to vector<17x2048xf32>
    %22 = arith.addf %19, %21 : vector<17x2048xf32>
    %23 = vector.extract_strided_slice %22 {offsets = [0, 0], sizes = [1, 2048], strides = [1, 1]} : vector<17x2048xf32> to vector<1x2048xf32>
    %cst_18 = arith.constant 0.000000e+00 : f32
    %24 = vector.broadcast %cst_18 : f32 to vector<1x2048xf32>
    %25 = arith.maximumf %23, %24 : vector<1x2048xf32>
    %cst_19 = arith.constant 0.000000e+00 : f32
    %26 = vector.broadcast %cst_19 : f32 to vector<1x2048xf32>
    %27 = arith.subf %26, %25 : vector<1x2048xf32>
    %cst_20 = arith.constant 1.000000e-01 : f32
    %28 = vector.broadcast %cst_20 : f32 to vector<1x2048xf32>
    %29 = arith.mulf %27, %28 : vector<1x2048xf32>
    %30 = math.exp %29 : vector<1x2048xf32>
    %cst_21 = arith.constant 1.000000e+00 : f32
    %31 = vector.broadcast %cst_21 : f32 to vector<1x2048xf32>
    %32 = arith.subf %31, %30 : vector<1x2048xf32>
    %cst_22 = arith.constant 1.000000e+00 : f32
    %33 = vector.broadcast %cst_22 : f32 to vector<1x256xf32>
    %cst_23 = arith.constant 0.000000e+00 : f32
    %34 = vector.broadcast %cst_23 : f32 to vector<17x256xf32>
    %35 = vector.extract_strided_slice %32 {offsets = [0, 0], sizes = [1, 256], strides = [1, 1]} : vector<1x2048xf32> to vector<1x256xf32>
    %36 = arith.mulf %33, %35 : vector<1x256xf32>
    %37 = vector.extract_strided_slice %22 {offsets = [0, 0], sizes = [17, 256], strides = [1, 1]} : vector<17x2048xf32> to vector<17x256xf32>
    %38 = vector.broadcast %36 : vector<1x256xf32> to vector<17x256xf32>
    %39 = arith.mulf %38, %37 : vector<17x256xf32>
    %40 = arith.addf %34, %39 : vector<17x256xf32>
    %cst_24 = arith.constant 1.000000e+00 : f32
    %41 = vector.broadcast %cst_24 : f32 to vector<1x256xf32>
    %42 = arith.subf %41, %35 : vector<1x256xf32>
    %43 = arith.mulf %33, %42 : vector<1x256xf32>
    %44 = vector.extract_strided_slice %32 {offsets = [0, 256], sizes = [1, 256], strides = [1, 1]} : vector<1x2048xf32> to vector<1x256xf32>
    %45 = arith.mulf %43, %44 : vector<1x256xf32>
    %46 = vector.extract_strided_slice %22 {offsets = [0, 256], sizes = [17, 256], strides = [1, 1]} : vector<17x2048xf32> to vector<17x256xf32>
    %47 = vector.broadcast %45 : vector<1x256xf32> to vector<17x256xf32>
    %48 = arith.mulf %47, %46 : vector<17x256xf32>
    %49 = arith.addf %40, %48 : vector<17x256xf32>
    %cst_25 = arith.constant 1.000000e+00 : f32
    %50 = vector.broadcast %cst_25 : f32 to vector<1x256xf32>
    %51 = arith.subf %50, %44 : vector<1x256xf32>
    %52 = arith.mulf %43, %51 : vector<1x256xf32>
    %53 = vector.extract_strided_slice %32 {offsets = [0, 512], sizes = [1, 256], strides = [1, 1]} : vector<1x2048xf32> to vector<1x256xf32>
    %54 = arith.mulf %52, %53 : vector<1x256xf32>
    %55 = vector.extract_strided_slice %22 {offsets = [0, 512], sizes = [17, 256], strides = [1, 1]} : vector<17x2048xf32> to vector<17x256xf32>
    %56 = vector.broadcast %54 : vector<1x256xf32> to vector<17x256xf32>
    %57 = arith.mulf %56, %55 : vector<17x256xf32>
    %58 = arith.addf %49, %57 : vector<17x256xf32>
    %cst_26 = arith.constant 1.000000e+00 : f32
    %59 = vector.broadcast %cst_26 : f32 to vector<1x256xf32>
    %60 = arith.subf %59, %53 : vector<1x256xf32>
    %61 = arith.mulf %52, %60 : vector<1x256xf32>
    %62 = vector.extract_strided_slice %32 {offsets = [0, 768], sizes = [1, 256], strides = [1, 1]} : vector<1x2048xf32> to vector<1x256xf32>
    %63 = arith.mulf %61, %62 : vector<1x256xf32>
    %64 = vector.extract_strided_slice %22 {offsets = [0, 768], sizes = [17, 256], strides = [1, 1]} : vector<17x2048xf32> to vector<17x256xf32>
    %65 = vector.broadcast %63 : vector<1x256xf32> to vector<17x256xf32>
    %66 = arith.mulf %65, %64 : vector<17x256xf32>
    %67 = arith.addf %58, %66 : vector<17x256xf32>
    %cst_27 = arith.constant 1.000000e+00 : f32
    %68 = vector.broadcast %cst_27 : f32 to vector<1x256xf32>
    %69 = arith.subf %68, %62 : vector<1x256xf32>
    %70 = arith.mulf %61, %69 : vector<1x256xf32>
    %71 = vector.extract_strided_slice %32 {offsets = [0, 1024], sizes = [1, 256], strides = [1, 1]} : vector<1x2048xf32> to vector<1x256xf32>
    %72 = arith.mulf %70, %71 : vector<1x256xf32>
    %73 = vector.extract_strided_slice %22 {offsets = [0, 1024], sizes = [17, 256], strides = [1, 1]} : vector<17x2048xf32> to vector<17x256xf32>
    %74 = vector.broadcast %72 : vector<1x256xf32> to vector<17x256xf32>
    %75 = arith.mulf %74, %73 : vector<17x256xf32>
    %76 = arith.addf %67, %75 : vector<17x256xf32>
    %cst_28 = arith.constant 1.000000e+00 : f32
    %77 = vector.broadcast %cst_28 : f32 to vector<1x256xf32>
    %78 = arith.subf %77, %71 : vector<1x256xf32>
    %79 = arith.mulf %70, %78 : vector<1x256xf32>
    %80 = vector.extract_strided_slice %32 {offsets = [0, 1280], sizes = [1, 256], strides = [1, 1]} : vector<1x2048xf32> to vector<1x256xf32>
    %81 = arith.mulf %79, %80 : vector<1x256xf32>
    %82 = vector.extract_strided_slice %22 {offsets = [0, 1280], sizes = [17, 256], strides = [1, 1]} : vector<17x2048xf32> to vector<17x256xf32>
    %83 = vector.broadcast %81 : vector<1x256xf32> to vector<17x256xf32>
    %84 = arith.mulf %83, %82 : vector<17x256xf32>
    %85 = arith.addf %76, %84 : vector<17x256xf32>
    %cst_29 = arith.constant 1.000000e+00 : f32
    %86 = vector.broadcast %cst_29 : f32 to vector<1x256xf32>
    %87 = arith.subf %86, %80 : vector<1x256xf32>
    %88 = arith.mulf %79, %87 : vector<1x256xf32>
    %89 = vector.extract_strided_slice %32 {offsets = [0, 1536], sizes = [1, 256], strides = [1, 1]} : vector<1x2048xf32> to vector<1x256xf32>
    %90 = arith.mulf %88, %89 : vector<1x256xf32>
    %91 = vector.extract_strided_slice %22 {offsets = [0, 1536], sizes = [17, 256], strides = [1, 1]} : vector<17x2048xf32> to vector<17x256xf32>
    %92 = vector.broadcast %90 : vector<1x256xf32> to vector<17x256xf32>
    %93 = arith.mulf %92, %91 : vector<17x256xf32>
    %94 = arith.addf %85, %93 : vector<17x256xf32>
    %cst_30 = arith.constant 1.000000e+00 : f32
    %95 = vector.broadcast %cst_30 : f32 to vector<1x256xf32>
    %96 = arith.subf %95, %89 : vector<1x256xf32>
    %97 = arith.mulf %88, %96 : vector<1x256xf32>
    %98 = vector.extract_strided_slice %32 {offsets = [0, 1792], sizes = [1, 256], strides = [1, 1]} : vector<1x2048xf32> to vector<1x256xf32>
    %99 = arith.mulf %97, %98 : vector<1x256xf32>
    %100 = vector.extract_strided_slice %22 {offsets = [0, 1792], sizes = [17, 256], strides = [1, 1]} : vector<17x2048xf32> to vector<17x256xf32>
    %101 = vector.broadcast %99 : vector<1x256xf32> to vector<17x256xf32>
    %102 = arith.mulf %101, %100 : vector<17x256xf32>
    %103 = arith.addf %94, %102 : vector<17x256xf32>
    %c0_31 = arith.constant 0 : index
    %c0_32 = arith.constant 0 : index
    %104 = vector.load %arg8[%c0_31, %c0_32] : memref<3x17xf32, #tpu.memory_space<vmem>>, vector<3x17xf32>
    %cst_33 = arith.constant dense<0.000000e+00> : vector<3x256xf32>
    %105 = tpu.matmul %104, %103, %cst_33 {dimension_numbers = #tpu.dot_dimension_numbers<[1], [0], [0], [1], [0, 0, 1, 1], [], []>} : vector<3x17xf32>, vector<17x256xf32>, vector<3x256xf32> -> vector<3x256xf32>
    %c0_34 = arith.constant 0 : index
    %c0_35 = arith.constant 0 : index
    %106 = vector.load %arg9[%c0_34, %c0_35] : memref<3x1xf32, #tpu.memory_space<vmem>>, vector<3x1xf32>
    %107 = vector.broadcast %106 : vector<3x1xf32> to vector<3x256xf32>
    %108 = arith.addf %105, %107 : vector<3x256xf32>
    %109 = arith.negf %108 : vector<3x256xf32>
    %110 = math.exp %109 : vector<3x256xf32>
    %cst_36 = arith.constant 1.000000e+00 : f32
    %111 = vector.broadcast %cst_36 : f32 to vector<3x256xf32>
    %112 = arith.addf %111, %110 : vector<3x256xf32>
    %113 = arith.divf %111, %112 : vector<3x256xf32>
    %c0_37 = arith.constant 0 : index
    %c0_38 = arith.constant 0 : index
    %c0_39 = arith.constant 0 : index
    %114 = vector.load %arg10[%c0_37, %c0_38, %c0_39] : memref<1x3x256xf32, #tpu.memory_space<vmem>>, vector<1x3x256xf32>
    %115 = vector.shape_cast %114 : vector<1x3x256xf32> to vector<3x256xf32>
    %116 = vector.shape_cast %113 : vector<3x256xf32> to vector<1x3x256xf32>
    tpu.vector_store %arg10[%c0_37, %c0_38, %c0_39], %116 {strides = array<i32>} : memref<1x3x256xf32, #tpu.memory_space<vmem>>, vector<1x3x256xf32>,
    return
  }
  func.func @transform_0(%arg0: i32) -> (i32, i32, i32) {
    %c0_i32 = arith.constant 0 : i32
    %c0_i32_0 = arith.constant 0 : i32
    %c0_i32_1 = arith.constant 0 : i32
    return %arg0, %c0_i32, %c0_i32_0 : i32, i32, i32
  }
  func.func @transform_1(%arg0: i32) -> (i32, i32) {
    %c0_i32 = arith.constant 0 : i32
    %c0_i32_0 = arith.constant 0 : i32
    %c0_i32_1 = arith.constant 0 : i32
    return %c0_i32, %c0_i32_0 : i32, i32
  }
  func.func @transform_2(%arg0: i32) -> (i32, i32) {
    %c0_i32 = arith.constant 0 : i32
    %c0_i32_0 = arith.constant 0 : i32
    %c0_i32_1 = arith.constant 0 : i32
    return %c0_i32, %c0_i32_0 : i32, i32
  }
  func.func @transform_3(%arg0: i32) -> (i32, i32) {
    %c0_i32 = arith.constant 0 : i32
    %c0_i32_0 = arith.constant 0 : i32
    %c0_i32_1 = arith.constant 0 : i32
    return %c0_i32, %c0_i32_0 : i32, i32
  }
  func.func @transform_4(%arg0: i32) -> (i32, i32) {
    %c0_i32 = arith.constant 0 : i32
    %c0_i32_0 = arith.constant 0 : i32
    %c0_i32_1 = arith.constant 0 : i32
    return %c0_i32, %c0_i32_0 : i32, i32
  }
  func.func @transform_5(%arg0: i32) -> (i32, i32) {
    %c0_i32 = arith.constant 0 : i32
    %c0_i32_0 = arith.constant 0 : i32
    %c0_i32_1 = arith.constant 0 : i32
    return %c0_i32, %c0_i32_0 : i32, i32
  }
  func.func @transform_6(%arg0: i32) -> (i32, i32) {
    %c0_i32 = arith.constant 0 : i32
    %c0_i32_0 = arith.constant 0 : i32
    %c0_i32_1 = arith.constant 0 : i32
    return %c0_i32, %c0_i32_0 : i32, i32
  }
  func.func @transform_7(%arg0: i32) -> (i32, i32) {
    %c0_i32 = arith.constant 0 : i32
    %c0_i32_0 = arith.constant 0 : i32
    %c0_i32_1 = arith.constant 0 : i32
    return %c0_i32, %c0_i32_0 : i32, i32
  }
  func.func @transform_8(%arg0: i32) -> (i32, i32) {
    %c0_i32 = arith.constant 0 : i32
    %c0_i32_0 = arith.constant 0 : i32
    %c0_i32_1 = arith.constant 0 : i32
    return %c0_i32, %c0_i32_0 : i32, i32
  }
  func.func @transform_9(%arg0: i32) -> (i32, i32, i32) {
    %c0_i32 = arith.constant 0 : i32
    %c0_i32_0 = arith.constant 0 : i32
    %c0_i32_1 = arith.constant 0 : i32
    return %arg0, %c0_i32, %c0_i32_0 : i32, i32, i32
  }
}

</mosaic_0001>

<llo_original>
// kernel: tpu_custom_call.1
$region0: #{tpu_custom_call.1}
  #allocation0 [shape = 'u32[]', space=smem, size = 0x4, offset = 0x4, fixed_abs, tag = 'smem constant byte address 0x4 - core index']
  #allocation1 [shape = 'u32[144,128]{1,0:T(1,128)}', space=vmem, size = 0x12000, scoped, tag = 'internal scratch']
  %s0 = inlined_call_operand.vmem [shape: f32[2,32,1], index: 0, kind: input, shape index: {}]
  %s1 = inlined_call_operand.hbm [shape: f32[64,2048], index: 1, kind: input, shape index: {}]
  %s2 = inlined_call_operand.vmem [shape: f32[64,32], index: 2, kind: input, shape index: {}]
  %s3 = inlined_call_operand.vmem [shape: bf16[64,64], index: 3, kind: input, shape index: {}]
  %s4 = inlined_call_operand.vmem [shape: f32[64,1], index: 4, kind: input, shape index: {}]
  %s5 = inlined_call_operand.vmem [shape: bf16[17,64], index: 5, kind: input, shape index: {}]
  %s6 = inlined_call_operand.vmem [shape: f32[17,1], index: 6, kind: input, shape index: {}]
  %s7 = inlined_call_operand.vmem [shape: f32[3,17], index: 7, kind: input, shape index: {}]
  %s8 = inlined_call_operand.vmem [shape: f32[3,1], index: 8, kind: input, shape index: {}]
  %s9 = inlined_call_operand.vmem [shape: f32[2,3,256], index: 9, kind: output, shape index: {}]
  %s10 = sld [smem:[#allocation0]]
  $region73: #{tpu_custom_call.1} parent=0
    _
  %s12 = ssub.s32 1, %s10
  %s13 = scalar_select 0, %s12, %s10
  $region1: #{tpu_custom_call.1} parent=0
    #allocation2 [shape = 'u8[524288]{0}', space=vmem, size = 0x80000, scoped, tag = 'input window, operand 1, single buffered']
    #allocation3 [shape = 's32[2]{0}', space=sflag, size = 0x8, scoped, tag = 'scoped memory for tpu_custom_call.1']
    %14 = vsyncpa [#allocation3], 0
    loop: start=0, step=1, limit=4
    $region2: #{tpu_custom_call.1} parent=1 // loop_pre_header
      _
    $region3: #{tpu_custom_call.1} parent=1 // loop_header
      %s16 = sphi 0, %s20
      %p17 = scmp.ge.s32.totalorder %s16, 4
      %s26 = sphi 0, %s28
      %s29 = sphi 0, %s26
      %s30 = sphi 0, %s29
      %s46 = sphi 0, %s30
      %s50 = sphi 0, %s50
      %s52 = sphi 0, %s50
      %s53 = sphi 0, %s52
      %s67 = sphi 0, %s53
      %s71 = sphi 0, %s71
      %s73 = sphi 0, %s71
      %s74 = sphi 0, %s73
      %s88 = sphi 0, %s74
      %s92 = sphi 0, %s92
      %s94 = sphi 0, %s92
      %s95 = sphi 0, %s94
      %s109 = sphi 0, %s95
      %s113 = sphi 0, %s113
      %s115 = sphi 0, %s113
      %s116 = sphi 0, %s115
      %s130 = sphi 0, %s116
      %s134 = sphi 0, %s134
      %s136 = sphi 0, %s134
      %s137 = sphi 0, %s136
      %s151 = sphi 0, %s137
      %s155 = sphi 0, %s155
      %s157 = sphi 0, %s155
      %s158 = sphi 0, %s157
      %s172 = sphi 0, %s158
      %s176 = sphi 0, %s176
      %s178 = sphi 0, %s176
      %s179 = sphi 0, %s178
      %s193 = sphi 0, %s179
      %s197 = sphi 0, %s197
      %s199 = sphi 0, %s197
      %s200 = sphi 0, %s199
      %s214 = sphi 0, %s200
      %s220 = sphi 0, %s222
      %s223 = sphi 0, %s220
      %s224 = sphi 0, %s223
      %s240 = sphi 0, %s224
    $region4: #{tpu_custom_call.1} parent=1 // loop_header_branch
      %19 = sbr.rel (%p17) target = $region8
    $region5: #{tpu_custom_call.1} parent=1 // loop_body
      %s21 = ssub.s32 %s16, 1
      %s22 = ssub.s32 %s16, 2
      %s23 = sadd.s32 %s16, 1
      %s24 = ssub.s32 %s16, %s23
      %p25 = scmp.eq.s32.totalorder %s24, 0
      %s27 = sadd.s32 %s26, 1
      %s28 = scalar_select %p25, %s26, %s27
      %p31 = pneg %p25
      %p32 = scmp.eq.s32.totalorder %s16, 1
      %p33 = por %p31, %p32
      %p34 = scmp.ne.s32.totalorder %s26, %s29
      %p35 = scmp.eq.s32.totalorder %s16, 0
      %p36 = por %p34, %p35
      %p37 = scmp.ne.s32.totalorder %s26, %s29
      %p38 = scmp.eq.s32.totalorder %s21, 1
      %p39 = por %p37, %p38
      %p40 = scmp.ne.s32.totalorder %s29, %s30
      %p41 = scmp.eq.s32.totalorder %s21, 0
      %p42 = por %p40, %p41
      %p43 = scmp.ne.s32.totalorder %s29, %s30
      %p44 = scmp.eq.s32.totalorder %s22, 1
      %p45 = por %p43, %p44
      %p47 = scmp.ne.s32.totalorder %s30, %s46
      %p48 = scmp.eq.s32.totalorder %s22, 0
      %p49 = por %p47, %p48
      %s51 = sadd.s32 %s50, 1
      %p54 = scmp.eq.s32.totalorder %s16, 1
      %p55 = scmp.ne.s32.totalorder %s50, %s52
      %p56 = scmp.eq.s32.totalorder %s16, 0
      %p57 = por %p55, %p56
      %p58 = scmp.ne.s32.totalorder %s50, %s52
      %p59 = scmp.eq.s32.totalorder %s21, 1
      %p60 = por %p58, %p59
      %p61 = scmp.ne.s32.totalorder %s52, %s53
      %p62 = scmp.eq.s32.totalorder %s21, 0
      %p63 = por %p61, %p62
      %p64 = scmp.ne.s32.totalorder %s52, %s53
      %p65 = scmp.eq.s32.totalorder %s22, 1
      %p66 = por %p64, %p65
      %p68 = scmp.ne.s32.totalorder %s53, %s67
      %p69 = scmp.eq.s32.totalorder %s22, 0
      %p70 = por %p68, %p69
      %s72 = sadd.s32 %s71, 1
      %p75 = scmp.eq.s32.totalorder %s16, 1
      %p76 = scmp.ne.s32.totalorder %s71, %s73
      %p77 = scmp.eq.s32.totalorder %s16, 0
      %p78 = por %p76, %p77
      %p79 = scmp.ne.s32.totalorder %s71, %s73
      %p80 = scmp.eq.s32.totalorder %s21, 1
      %p81 = por %p79, %p80
      %p82 = scmp.ne.s32.totalorder %s73, %s74
      %p83 = scmp.eq.s32.totalorder %s21, 0
      %p84 = por %p82, %p83
      %p85 = scmp.ne.s32.totalorder %s73, %s74
      %p86 = scmp.eq.s32.totalorder %s22, 1
      %p87 = por %p85, %p86
      %p89 = scmp.ne.s32.totalorder %s74, %s88
      %p90 = scmp.eq.s32.totalorder %s22, 0
      %p91 = por %p89, %p90
      %s93 = sadd.s32 %s92, 1
      %p96 = scmp.eq.s32.totalorder %s16, 1
      %p97 = scmp.ne.s32.totalorder %s92, %s94
      %p98 = scmp.eq.s32.totalorder %s16, 0
      %p99 = por %p97, %p98
      %p100 = scmp.ne.s32.totalorder %s92, %s94
      %p101 = scmp.eq.s32.totalorder %s21, 1
      %p102 = por %p100, %p101
      %p103 = scmp.ne.s32.totalorder %s94, %s95
      %p104 = scmp.eq.s32.totalorder %s21, 0
      %p105 = por %p103, %p104
      %p106 = scmp.ne.s32.totalorder %s94, %s95
      %p107 = scmp.eq.s32.totalorder %s22, 1
      %p108 = por %p106, %p107
      %p110 = scmp.ne.s32.totalorder %s95, %s109
      %p111 = scmp.eq.s32.totalorder %s22, 0
      %p112 = por %p110, %p111
      %s114 = sadd.s32 %s113, 1
      %p117 = scmp.eq.s32.totalorder %s16, 1
      %p118 = scmp.ne.s32.totalorder %s113, %s115
      %p119 = scmp.eq.s32.totalorder %s16, 0
      %p120 = por %p118, %p119
      %p121 = scmp.ne.s32.totalorder %s113, %s115
      %p122 = scmp.eq.s32.totalorder %s21, 1
      %p123 = por %p121, %p122
      %p124 = scmp.ne.s32.totalorder %s115, %s116
      %p125 = scmp.eq.s32.totalorder %s21, 0
      %p126 = por %p124, %p125
      %p127 = scmp.ne.s32.totalorder %s115, %s116
      %p128 = scmp.eq.s32.totalorder %s22, 1
      %p129 = por %p127, %p128
      %p131 = scmp.ne.s32.totalorder %s116, %s130
      %p132 = scmp.eq.s32.totalorder %s22, 0
      %p133 = por %p131, %p132
      %s135 = sadd.s32 %s134, 1
      %p138 = scmp.eq.s32.totalorder %s16, 1
      %p139 = scmp.ne.s32.totalorder %s134, %s136
      %p140 = scmp.eq.s32.totalorder %s16, 0
      %p141 = por %p139, %p140
      %p142 = scmp.ne.s32.totalorder %s134, %s136
      %p143 = scmp.eq.s32.totalorder %s21, 1
      %p144 = por %p142, %p143
      %p145 = scmp.ne.s32.totalorder %s136, %s137
      %p146 = scmp.eq.s32.totalorder %s21, 0
      %p147 = por %p145, %p146
      %p148 = scmp.ne.s32.totalorder %s136, %s137
      %p149 = scmp.eq.s32.totalorder %s22, 1
      %p150 = por %p148, %p149
      %p152 = scmp.ne.s32.totalorder %s137, %s151
      %p153 = scmp.eq.s32.totalorder %s22, 0
      %p154 = por %p152, %p153
      %s156 = sadd.s32 %s155, 1
      %p159 = scmp.eq.s32.totalorder %s16, 1
      %p160 = scmp.ne.s32.totalorder %s155, %s157
      %p161 = scmp.eq.s32.totalorder %s16, 0
      %p162 = por %p160, %p161
      %p163 = scmp.ne.s32.totalorder %s155, %s157
      %p164 = scmp.eq.s32.totalorder %s21, 1
      %p165 = por %p163, %p164
      %p166 = scmp.ne.s32.totalorder %s157, %s158
      %p167 = scmp.eq.s32.totalorder %s21, 0
      %p168 = por %p166, %p167
      %p169 = scmp.ne.s32.totalorder %s157, %s158
      %p170 = scmp.eq.s32.totalorder %s22, 1
      %p171 = por %p169, %p170
      %p173 = scmp.ne.s32.totalorder %s158, %s172
      %p174 = scmp.eq.s32.totalorder %s22, 0
      %p175 = por %p173, %p174
      %s177 = sadd.s32 %s176, 1
      %p180 = scmp.eq.s32.totalorder %s16, 1
      %p181 = scmp.ne.s32.totalorder %s176, %s178
      %p182 = scmp.eq.s32.totalorder %s16, 0
      %p183 = por %p181, %p182
      %p184 = scmp.ne.s32.totalorder %s176, %s178
      %p185 = scmp.eq.s32.totalorder %s21, 1
      %p186 = por %p184, %p185
      %p187 = scmp.ne.s32.totalorder %s178, %s179
      %p188 = scmp.eq.s32.totalorder %s21, 0
      %p189 = por %p187, %p188
      %p190 = scmp.ne.s32.totalorder %s178, %s179
      %p191 = scmp.eq.s32.totalorder %s22, 1
      %p192 = por %p190, %p191
      %p194 = scmp.ne.s32.totalorder %s179, %s193
      %p195 = scmp.eq.s32.totalorder %s22, 0
      %p196 = por %p194, %p195
      %s198 = sadd.s32 %s197, 1
      %p201 = scmp.eq.s32.totalorder %s16, 1
      %p202 = scmp.ne.s32.totalorder %s197, %s199
      %p203 = scmp.eq.s32.totalorder %s16, 0
      %p204 = por %p202, %p203
      %p205 = scmp.ne.s32.totalorder %s197, %s199
      %p206 = scmp.eq.s32.totalorder %s21, 1
      %p207 = por %p205, %p206
      %p208 = scmp.ne.s32.totalorder %s199, %s200
      %p209 = scmp.eq.s32.totalorder %s21, 0
      %p210 = por %p208, %p209
      %p211 = scmp.ne.s32.totalorder %s199, %s200
      %p212 = scmp.eq.s32.totalorder %s22, 1
      %p213 = por %p211, %p212
      %p215 = scmp.ne.s32.totalorder %s200, %s214
      %p216 = scmp.eq.s32.totalorder %s22, 0
      %p217 = por %p215, %p216
      %s218 = ssub.s32 %s16, %s23
      %p219 = scmp.eq.s32.totalorder %s218, 0
      %s221 = sadd.s32 %s220, 1
      %s222 = scalar_select %p219, %s220, %s221
      %p225 = pneg %p219
      %p226 = scmp.eq.s32.totalorder %s16, 1
      %p227 = por %p225, %p226
      %p228 = scmp.ne.s32.totalorder %s220, %s223
      %p229 = scmp.eq.s32.totalorder %s16, 0
      %p230 = por %p228, %p229
      %p231 = scmp.ne.s32.totalorder %s220, %s223
      %p232 = scmp.eq.s32.totalorder %s21, 1
      %p233 = por %p231, %p232
      %p234 = scmp.ne.s32.totalorder %s223, %s224
      %p235 = scmp.eq.s32.totalorder %s21, 0
      %p236 = por %p234, %p235
      %p237 = scmp.ne.s32.totalorder %s223, %s224
      %p238 = scmp.eq.s32.totalorder %s22, 1
      %p239 = por %p237, %p238
      %p241 = scmp.ne.s32.totalorder %s224, %s240
      %p242 = scmp.eq.s32.totalorder %s22, 0
      %p243 = por %p241, %p242
      %p244 = scmp.le.s32.totalorder 1, %s16
      %p245 = scmp.lt.s32.totalorder %s16, 3
      %p246 = pnand %p244, %p245
      %p247 = pneg %p246
      // Predicated region
      $region9: #{tpu_custom_call.1} parent=5 // pred_check
        _
      $region10: #{tpu_custom_call.1} parent=5 // pred_check_branch
        %249 = sbr.rel (%p246) target = $region12
      $region11: #{tpu_custom_call.1} parent=5 // pred_region
        %s250 = ssub.s32 %s16, 1
        // Predicated region
        $region13: #{tpu_custom_call.1} parent=11 // pred_check
          %p251 = pneg %p63
        $region14: #{tpu_custom_call.1} parent=11 // pred_check_branch
          %253 = sbr.rel (%p251) target = $region16
        $region15: #{tpu_custom_call.1} parent=11 // pred_region
          %s255 = ssub.s32 16384, 16384
          %256 = vsyncadd [#allocation3], %s255
          %s257 = sshll.u32 [#allocation2], 4
          %s258 = int_to_ptr.vmem [resolvable:$true] %s257
          %263 = dma.hbm_to_vmem [thread:$0]  %s1, 16384, %s258, [#allocation3], 2048, 2048, 128
        $region16: #{tpu_custom_call.1} parent=11 // pred_fallthru
          _
        // Predicated region
        $region17: #{tpu_custom_call.1} parent=11 // pred_check
          %p264 = pneg %p84
        $region18: #{tpu_custom_call.1} parent=11 // pred_check_branch
          %266 = sbr.rel (%p264) target = $region20
        $region19: #{tpu_custom_call.1} parent=11 // pred_region
          _
        $region20: #{tpu_custom_call.1} parent=11 // pred_fallthru
          _
        // Predicated region
        $region21: #{tpu_custom_call.1} parent=11 // pred_check
          %p267 = pneg %p105
        $region22: #{tpu_custom_call.1} parent=11 // pred_check_branch
          %269 = sbr.rel (%p267) target = $region24
        $region23: #{tpu_custom_call.1} parent=11 // pred_region
          _
        $region24: #{tpu_custom_call.1} parent=11 // pred_fallthru
          _
        // Predicated region
        $region25: #{tpu_custom_call.1} parent=11 // pred_check
          %p270 = pneg %p126
        $region26: #{tpu_custom_call.1} parent=11 // pred_check_branch
          %272 = sbr.rel (%p270) target = $region28
        $region27: #{tpu_custom_call.1} parent=11 // pred_region
          _
        $region28: #{tpu_custom_call.1} parent=11 // pred_fallthru
          _
        // Predicated region
        $region29: #{tpu_custom_call.1} parent=11 // pred_check
          %p273 = pneg %p147
        $region30: #{tpu_custom_call.1} parent=11 // pred_check_branch
          %275 = sbr.rel (%p273) target = $region32
        $region31: #{tpu_custom_call.1} parent=11 // pred_region
          _
        $region32: #{tpu_custom_call.1} parent=11 // pred_fallthru
          _
        // Predicated region
        $region33: #{tpu_custom_call.1} parent=11 // pred_check
          %p276 = pneg %p168
        $region34: #{tpu_custom_call.1} parent=11 // pred_check_branch
          %278 = sbr.rel (%p276) target = $region36
        $region35: #{tpu_custom_call.1} parent=11 // pred_region
          _
        $region36: #{tpu_custom_call.1} parent=11 // pred_fallthru
          _
        // Predicated region
        $region37: #{tpu_custom_call.1} parent=11 // pred_check
          %p279 = pneg %p189
        $region38: #{tpu_custom_call.1} parent=11 // pred_check_branch
          %281 = sbr.rel (%p279) target = $region40
        $region39: #{tpu_custom_call.1} parent=11 // pred_region
          _
        $region40: #{tpu_custom_call.1} parent=11 // pred_fallthru
          _
        // Predicated region
        $region41: #{tpu_custom_call.1} parent=11 // pred_check
          %p282 = pneg %p210
        $region42: #{tpu_custom_call.1} parent=11 // pred_check_branch
          %284 = sbr.rel (%p282) target = $region44
        $region43: #{tpu_custom_call.1} parent=11 // pred_region
          _
        $region44: #{tpu_custom_call.1} parent=11 // pred_fallthru
          _
      $region12: #{tpu_custom_call.1} parent=5 // pred_fallthru
        _
      %p285 = scmp.lt.s32.totalorder %s16, 2
      // Predicated region
      $region45: #{tpu_custom_call.1} parent=5 // pred_check
        %p286 = pneg %p285
      $region46: #{tpu_custom_call.1} parent=5 // pred_check_branch
        %288 = sbr.rel (%p286) target = $region48
      $region47: #{tpu_custom_call.1} parent=5 // pred_region
        // Predicated region
        $region49: #{tpu_custom_call.1} parent=47 // pred_check
          %p289 = pneg %p36
        $region50: #{tpu_custom_call.1} parent=47 // pred_check_branch
          %291 = sbr.rel (%p289) target = $region52
        $region51: #{tpu_custom_call.1} parent=47 // pred_region
          %p292 = scmp.lt.s32.totalorder %s16, 1
          %s293 = scalar_select %p292, %s16, 1
          %s294 = smul.addr %s293, 4
          %s295 = smul.addr %s294, 8
          %s296 = scalar_lea.vmem %s0, %s295
        $region52: #{tpu_custom_call.1} parent=47 // pred_fallthru
          _
      $region48: #{tpu_custom_call.1} parent=5 // pred_fallthru
        _
      %p297 = scmp.le.s32.totalorder 1, %s16
      %p298 = scmp.lt.s32.totalorder %s16, 3
      %p299 = pnand %p297, %p298
      %p300 = pneg %p299
      // Predicated region
      $region53: #{tpu_custom_call.1} parent=5 // pred_check
        _
      $region54: #{tpu_custom_call.1} parent=5 // pred_check_branch
        %302 = sbr.rel (%p299) target = $region56
      $region55: #{tpu_custom_call.1} parent=5 // pred_region
        %s303 = ssub.s32 %s16, 1
        // Predicated region
        $region57: #{tpu_custom_call.1} parent=55 // pred_check
          %p304 = pneg %p63
        $region58: #{tpu_custom_call.1} parent=55 // pred_check_branch
          %306 = sbr.rel (%p304) target = $region60
        $region59: #{tpu_custom_call.1} parent=55 // pred_region
          %307 = dma.done [#allocation3], 16384
        $region60: #{tpu_custom_call.1} parent=55 // pred_fallthru
          _
        %p308 = scmp.lt.s32.totalorder %s21, 1
        %s309 = scalar_select %p308, %s21, 1
        %s310 = smul.addr %s309, 4
        %s311 = smul.addr %s310, 8
        %s312 = scalar_lea.vmem %s0, %s311
        %p313 = pneg %p42
        %p314 = pneg %p39
        %p315 = pneg %p63
        %p316 = pneg %p60
        %p317 = pneg %p84
        %p318 = pneg %p81
        %p319 = pneg %p105
        %p320 = pneg %p102
        %p321 = pneg %p126
        %p322 = pneg %p123
        %p323 = pneg %p147
        %p324 = pneg %p144
        %p325 = pneg %p168
        %p326 = pneg %p165
        %p327 = pneg %p189
        %p328 = pneg %p186
        %p329 = pneg %p210
        %p330 = pneg %p207
        %p331 = pneg %p236
        %p332 = pneg %p233
        %p333 = scmp.lt.s32.totalorder %s21, 1
        %s334 = scalar_select %p333, %s21, 1
        %s335 = smul.addr %s334, 2
        %s336 = smul.addr %s335, 4
        %s337 = scalar_lea.vmem %s9, %s336
        %p338 = scmp.lt.s32.totalorder %s21, 1
        %s339 = scalar_select %p338, %s21, 1
        %s340 = smul.addr %s339, 4
        %s341 = smul.addr %s340, 8
        %s342 = scalar_lea.vmem %s0, %s341
        %p343 = scmp.lt.s32.totalorder %s21, 1
        %s344 = scalar_select %p343, %s21, 1
        %s345 = smul.addr %s344, 2
        %s346 = smul.addr %s345, 4
        %s347 = scalar_lea.vmem %s9, %s346
        %v349 = vld [vmem:[%s342] sm:$0xff]
        %v350 = vld [vmem:[%s342 + $0x8] sm:$0xff]
        %v351 = vld [vmem:[%s342 + $0x10] sm:$0xff]
        %v352 = vld [vmem:[%s342 + $0x18] sm:$0xff]
        %v353 = vld [vmem:[%s2] sm:$0xff]
        %v354 = vld [vmem:[%s2 + $0x8] sm:$0xff]
        %v355 = vld [vmem:[%s2 + $0x10] sm:$0xff]
        %v356 = vld [vmem:[%s2 + $0x18] sm:$0xff]
        %v357 = vld [vmem:[%s2 + $0x20] sm:$0xff]
        %v358 = vld [vmem:[%s2 + $0x28] sm:$0xff]
        %v359 = vld [vmem:[%s2 + $0x30] sm:$0xff]
        %v360 = vld [vmem:[%s2 + $0x38] sm:$0xff]
        %vm361 = vcmask 261120
        %v363 = vsel %vm361, %v353, 0
        %v366 = vsel %vm361, %v354, 0
        %v369 = vsel %vm361, %v355, 0
        %v372 = vsel %vm361, %v356, 0
        %v375 = vsel %vm361, %v357, 0
        %v378 = vsel %vm361, %v358, 0
        %v381 = vsel %vm361, %v359, 0
        %v384 = vsel %vm361, %v360, 0
        %386 = vmatprep.subr.mxu0 0.0
        %387 = vmatpush1.msra.mxu0 %v349
        %388 = vmatprep.subr.mxu0 0.0
        %389 = vmatpush1.msra.mxu0 %v350
        %390 = vmatprep.subr.mxu0 0.0
        %391 = vmatpush1.msra.mxu0 %v351
        %392 = vmatprep.subr.mxu0 0.0
        %393 = vmatpush1.msra.mxu0 %v352
        %394 = vmatprep.subr.mxu0 0.0
        %395 = vmatpush1.msra.mxu0 0.0
        %396 = vmatprep.subr.mxu0 0.0
        %397 = vmatpush1.msra.mxu0 0.0
        %398 = vmatprep.subr.mxu0 0.0
        %399 = vmatpush1.msra.mxu0 0.0
        %400 = vmatprep.subr.mxu0 0.0
        %401 = vmatpush1.msra.mxu0 0.0
        %402 = vmatprep.subr.mxu0 0.0
        %403 = vmatpush1.msra.mxu0 0.0
        %404 = vmatprep.subr.mxu0 0.0
        %405 = vmatpush1.msra.mxu0 0.0
        %406 = vmatprep.subr.mxu0 0.0
        %407 = vmatpush1.msra.mxu0 0.0
        %408 = vmatprep.subr.mxu0 0.0
        %409 = vmatpush1.msra.mxu0 0.0
        %410 = vmatprep.subr.mxu0 0.0
        %411 = vmatpush1.msra.mxu0 0.0
        %412 = vmatprep.subr.mxu0 0.0
        %413 = vmatpush1.msra.mxu0 0.0
        %414 = vmatprep.subr.mxu0 0.0
        %415 = vmatpush1.msra.mxu0 0.0
        %416 = vmatprep.subr.mxu0 0.0
        %417 = vmatpush1.msra.mxu0 0.0
        %418 = vmatprep.subr.mxu0 0.0
        %419 = vmatpush1.msra.mxu0 0.0
        %420 = vmatprep.subr.mxu0 0.0
        %421 = vmatpush1.msra.mxu0 0.0
        %422 = vmatprep.subr.mxu0 0.0
        %423 = vmatpush1.msra.mxu0 0.0
        %424 = vmatprep.subr.mxu0 0.0
        %425 = vmatpush1.msra.mxu0 0.0
        %426 = vmatprep.subr.mxu0 0.0
        %427 = vmatpush1.msra.mxu0 0.0
        %428 = vmatprep.subr.mxu0 0.0
        %429 = vmatpush1.msra.mxu0 0.0
        %430 = vmatprep.subr.mxu0 0.0
        %431 = vmatpush1.msra.mxu0 0.0
        %432 = vmatprep.subr.mxu0 0.0
        %433 = vmatpush1.msra.mxu0 0.0
        %434 = vmatprep.subr.mxu0 0.0
        %435 = vmatpush1.msra.mxu0 0.0
        %436 = vmatprep.subr.mxu0 0.0
        %437 = vmatpush1.msra.mxu0 0.0
        %438 = vmatprep.subr.mxu0 0.0
        %439 = vmatpush1.msra.mxu0 0.0
        %440 = vmatprep.subr.mxu0 0.0
        %441 = vmatpush1.msra.mxu0 0.0
        %442 = vmatprep.subr.mxu0 0.0
        %443 = vmatpush1.msra.mxu0 0.0
        %444 = vmatprep.subr.mxu0 0.0
        %445 = vmatpush1.msra.mxu0 0.0
        %446 = vmatprep.subr.mxu0 0.0
        %447 = vmatpush1.msra.mxu0 0.0
        %448 = vmatprep.subr.mxu0 0.0
        %449 = vmatpush1.msra.mxu0 0.0
        %450 = vmatprep.mubr.f32.mxu0 0.0
        %451 = vmatmul.mubr.f32.gmra.mrb[0].mxu0 %v363
        %v452 = vpop.f32.mrb[0].mxu0
        %v453 = vadd.f32 0.0, %v452
        %v454 = vpop.f32.mrb[0].mxu0
        %455 = vmatprep.mubr.f32.mxu0 0.0
        %456 = vmatmul.mubr.f32.gmra.mrb[0].mxu0 %v366
        %v457 = vpop.f32.mrb[0].mxu0
        %v458 = vadd.f32 0.0, %v457
        %v459 = vpop.f32.mrb[0].mxu0
        %460 = vmatprep.mubr.f32.mxu0 0.0
        %461 = vmatmul.mubr.f32.gmra.mrb[0].mxu0 %v369
        %v462 = vpop.f32.mrb[0].mxu0
        %v463 = vadd.f32 0.0, %v462
        %v464 = vpop.f32.mrb[0].mxu0
        %465 = vmatprep.mubr.f32.mxu0 0.0
        %466 = vmatmul.mubr.f32.gmra.mrb[0].mxu0 %v372
        %v467 = vpop.f32.mrb[0].mxu0
        %v468 = vadd.f32 0.0, %v467
        %v469 = vpop.f32.mrb[0].mxu0
        %470 = vmatprep.mubr.f32.mxu0 0.0
        %471 = vmatmul.mubr.f32.gmra.mrb[0].mxu0 %v375
        %v472 = vpop.f32.mrb[0].mxu0
        %v473 = vadd.f32 0.0, %v472
        %v474 = vpop.f32.mrb[0].mxu0
        %475 = vmatprep.mubr.f32.mxu0 0.0
        %476 = vmatmul.mubr.f32.gmra.mrb[0].mxu0 %v378
        %v477 = vpop.f32.mrb[0].mxu0
        %v478 = vadd.f32 0.0, %v477
        %v479 = vpop.f32.mrb[0].mxu0
        %480 = vmatprep.mubr.f32.mxu0 0.0
        %481 = vmatmul.mubr.f32.gmra.mrb[0].mxu0 %v381
        %v482 = vpop.f32.mrb[0].mxu0
        %v483 = vadd.f32 0.0, %v482
        %v484 = vpop.f32.mrb[0].mxu0
        %485 = vmatprep.mubr.f32.mxu0 0.0
        %486 = vmatmul.mubr.f32.gmra.mrb[0].mxu0 %v384
        %v487 = vpop.f32.mrb[0].mxu0
        %v488 = vadd.f32 0.0, %v487
        %v489 = vpop.f32.mrb[0].mxu0
        %490 = vdwg.mxu0
        %v491 = vld [vmem:[#allocation2] sm:$0xff]
        %v492 = vld [vmem:[#allocation2 + $0x8] sm:$0xff]
        %v493 = vld [vmem:[#allocation2 + $0x10] sm:$0xff]
        %v494 = vld [vmem:[#allocation2 + $0x18] sm:$0xff]
        %v495 = vld [vmem:[#allocation2 + $0x20] sm:$0xff]
        %v496 = vld [vmem:[#allocation2 + $0x28] sm:$0xff]
        %v497 = vld [vmem:[#allocation2 + $0x30] sm:$0xff]
        %v498 = vld [vmem:[#allocation2 + $0x38] sm:$0xff]
        %v499 = vld [vmem:[#allocation2 + $0x40] sm:$0xff]
        %v500 = vld [vmem:[#allocation2 + $0x48] sm:$0xff]
        %v501 = vld [vmem:[#allocation2 + $0x50] sm:$0xff]
        %v502 = vld [vmem:[#allocation2 + $0x58] sm:$0xff]
        %v503 = vld [vmem:[#allocation2 + $0x60] sm:$0xff]
        %v504 = vld [vmem:[#allocation2 + $0x68] sm:$0xff]
        %v505 = vld [vmem:[#allocation2 + $0x70] sm:$0xff]
        %v506 = vld [vmem:[#allocation2 + $0x78] sm:$0xff]
        %v507 = vld [vmem:[#allocation2 + $0x80] sm:$0xff]
        %v508 = vld [vmem:[#allocation2 + $0x88] sm:$0xff]
        %v509 = vld [vmem:[#allocation2 + $0x90] sm:$0xff]
        %v510 = vld [vmem:[#allocation2 + $0x98] sm:$0xff]
        %v511 = vld [vmem:[#allocation2 + $0xa0] sm:$0xff]
        %v512 = vld [vmem:[#allocation2 + $0xa8] sm:$0xff]
        %v513 = vld [vmem:[#allocation2 + $0xb0] sm:$0xff]
        %v514 = vld [vmem:[#allocation2 + $0xb8] sm:$0xff]
        %v515 = vld [vmem:[#allocation2 + $0xc0] sm:$0xff]
        %v516 = vld [vmem:[#allocation2 + $0xc8] sm:$0xff]
        %v517 = vld [vmem:[#allocation2 + $0xd0] sm:$0xff]
        %v518 = vld [vmem:[#allocation2 + $0xd8] sm:$0xff]
        %v519 = vld [vmem:[#allocation2 + $0xe0] sm:$0xff]
        %v520 = vld [vmem:[#allocation2 + $0xe8] sm:$0xff]
        %v521 = vld [vmem:[#allocation2 + $0xf0] sm:$0xff]
        %v522 = vld [vmem:[#allocation2 + $0xf8] sm:$0xff]
        %v523 = vld [vmem:[#allocation2 + $0x100] sm:$0xff]
        %v524 = vld [vmem:[#allocation2 + $0x108] sm:$0xff]
        %v525 = vld [vmem:[#allocation2 + $0x110] sm:$0xff]
        %v526 = vld [vmem:[#allocation2 + $0x118] sm:$0xff]
        %v527 = vld [vmem:[#allocation2 + $0x120] sm:$0xff]
        %v528 = vld [vmem:[#allocation2 + $0x128] sm:$0xff]
        %v529 = vld [vmem:[#allocation2 + $0x130] sm:$0xff]
        %v530 = vld [vmem:[#allocation2 + $0x138] sm:$0xff]
        %v531 = vld [vmem:[#allocation2 + $0x140] sm:$0xff]
        %v532 = vld [vmem:[#allocation2 + $0x148] sm:$0xff]
        %v533 = vld [vmem:[#allocation2 + $0x150] sm:$0xff]
        %v534 = vld [vmem:[#allocation2 + $0x158] sm:$0xff]
        %v535 = vld [vmem:[#allocation2 + $0x160] sm:$0xff]
        %v536 = vld [vmem:[#allocation2 + $0x168] sm:$0xff]
        %v537 = vld [vmem:[#allocation2 + $0x170] sm:$0xff]
        %v538 = vld [vmem:[#allocation2 + $0x178] sm:$0xff]
        %v539 = vld [vmem:[#allocation2 + $0x180] sm:$0xff]
        %v540 = vld [vmem:[#allocation2 + $0x188] sm:$0xff]
        %v541 = vld [vmem:[#allocation2 + $0x190] sm:$0xff]
        %v542 = vld [vmem:[#allocation2 + $0x198] sm:$0xff]
        %v543 = vld [vmem:[#allocation2 + $0x1a0] sm:$0xff]
        %v544 = vld [vmem:[#allocation2 + $0x1a8] sm:$0xff]
        %v545 = vld [vmem:[#allocation2 + $0x1b0] sm:$0xff]
        %v546 = vld [vmem:[#allocation2 + $0x1b8] sm:$0xff]
        %v547 = vld [vmem:[#allocation2 + $0x1c0] sm:$0xff]
        %v548 = vld [vmem:[#allocation2 + $0x1c8] sm:$0xff]
        %v549 = vld [vmem:[#allocation2 + $0x1d0] sm:$0xff]
        %v550 = vld [vmem:[#allocation2 + $0x1d8] sm:$0xff]
        %v551 = vld [vmem:[#allocation2 + $0x1e0] sm:$0xff]
        %v552 = vld [vmem:[#allocation2 + $0x1e8] sm:$0xff]
        %v553 = vld [vmem:[#allocation2 + $0x1f0] sm:$0xff]
        %v554 = vld [vmem:[#allocation2 + $0x1f8] sm:$0xff]
        %v555 = vld [vmem:[#allocation2 + $0x200] sm:$0xff]
        %v556 = vld [vmem:[#allocation2 + $0x208] sm:$0xff]
        %v557 = vld [vmem:[#allocation2 + $0x210] sm:$0xff]
        %v558 = vld [vmem:[#allocation2 + $0x218] sm:$0xff]
        %v559 = vld [vmem:[#allocation2 + $0x220] sm:$0xff]
        %v560 = vld [vmem:[#allocation2 + $0x228] sm:$0xff]
        %v561 = vld [vmem:[#allocation2 + $0x230] sm:$0xff]
        %v562 = vld [vmem:[#allocation2 + $0x238] sm:$0xff]
        %v563 = vld [vmem:[#allocation2 + $0x240] sm:$0xff]
        %v564 = vld [vmem:[#allocation2 + $0x248] sm:$0xff]
        %v565 = vld [vmem:[#allocation2 + $0x250] sm:$0xff]
        %v566 = vld [vmem:[#allocation2 + $0x258] sm:$0xff]
        %v567 = vld [vmem:[#allocation2 + $0x260] sm:$0xff]
        %v568 = vld [vmem:[#allocation2 + $0x268] sm:$0xff]
        %v569 = vld [vmem:[#allocation2 + $0x270] sm:$0xff]
        %v570 = vld [vmem:[#allocation2 + $0x278] sm:$0xff]
        %v571 = vld [vmem:[#allocation2 + $0x280] sm:$0xff]
        %v572 = vld [vmem:[#allocation2 + $0x288] sm:$0xff]
        %v573 = vld [vmem:[#allocation2 + $0x290] sm:$0xff]
        %v574 = vld [vmem:[#allocation2 + $0x298] sm:$0xff]
        %v575 = vld [vmem:[#allocation2 + $0x2a0] sm:$0xff]
        %v576 = vld [vmem:[#allocation2 + $0x2a8] sm:$0xff]
        %v577 = vld [vmem:[#allocation2 + $0x2b0] sm:$0xff]
        %v578 = vld [vmem:[#allocation2 + $0x2b8] sm:$0xff]
        %v579 = vld [vmem:[#allocation2 + $0x2c0] sm:$0xff]
        %v580 = vld [vmem:[#allocation2 + $0x2c8] sm:$0xff]
        %v581 = vld [vmem:[#allocation2 + $0x2d0] sm:$0xff]
        %v582 = vld [vmem:[#allocation2 + $0x2d8] sm:$0xff]
        %v583 = vld [vmem:[#allocation2 + $0x2e0] sm:$0xff]
        %v584 = vld [vmem:[#allocation2 + $0x2e8] sm:$0xff]
        %v585 = vld [vmem:[#allocation2 + $0x2f0] sm:$0xff]
        %v586 = vld [vmem:[#allocation2 + $0x2f8] sm:$0xff]
        %v587 = vld [vmem:[#allocation2 + $0x300] sm:$0xff]
        %v588 = vld [vmem:[#allocation2 + $0x308] sm:$0xff]
        %v589 = vld [vmem:[#allocation2 + $0x310] sm:$0xff]
        %v590 = vld [vmem:[#allocation2 + $0x318] sm:$0xff]
        %v591 = vld [vmem:[#allocation2 + $0x320] sm:$0xff]
        %v592 = vld [vmem:[#allocation2 + $0x328] sm:$0xff]
        %v593 = vld [vmem:[#allocation2 + $0x330] sm:$0xff]
        %v594 = vld [vmem:[#allocation2 + $0x338] sm:$0xff]
        %v595 = vld [vmem:[#allocation2 + $0x340] sm:$0xff]
        %v596 = vld [vmem:[#allocation2 + $0x348] sm:$0xff]
        %v597 = vld [vmem:[#allocation2 + $0x350] sm:$0xff]
        %v598 = vld [vmem:[#allocation2 + $0x358] sm:$0xff]
        %v599 = vld [vmem:[#allocation2 + $0x360] sm:$0xff]
        %v600 = vld [vmem:[#allocation2 + $0x368] sm:$0xff]
        %v601 = vld [vmem:[#allocation2 + $0x370] sm:$0xff]
        %v602 = vld [vmem:[#allocation2 + $0x378] sm:$0xff]
        %v603 = vld [vmem:[#allocation2 + $0x380] sm:$0xff]
        %v604 = vld [vmem:[#allocation2 + $0x388] sm:$0xff]
        %v605 = vld [vmem:[#allocation2 + $0x390] sm:$0xff]
        %v606 = vld [vmem:[#allocation2 + $0x398] sm:$0xff]
        %v607 = vld [vmem:[#allocation2 + $0x3a0] sm:$0xff]
        %v608 = vld [vmem:[#allocation2 + $0x3a8] sm:$0xff]
        %v609 = vld [vmem:[#allocation2 + $0x3b0] sm:$0xff]
        %v610 = vld [vmem:[#allocation2 + $0x3b8] sm:$0xff]
        %v611 = vld [vmem:[#allocation2 + $0x3c0] sm:$0xff]
        %v612 = vld [vmem:[#allocation2 + $0x3c8] sm:$0xff]
        %v613 = vld [vmem:[#allocation2 + $0x3d0] sm:$0xff]
        %v614 = vld [vmem:[#allocation2 + $0x3d8] sm:$0xff]
        %v615 = vld [vmem:[#allocation2 + $0x3e0] sm:$0xff]
        %v616 = vld [vmem:[#allocation2 + $0x3e8] sm:$0xff]
        %v617 = vld [vmem:[#allocation2 + $0x3f0] sm:$0xff]
        %v618 = vld [vmem:[#allocation2 + $0x3f8] sm:$0xff]
        %620 = vset.pattern.permute.xlu0 0
        %621 = vperm.xlu0 %620, %v453
        %v622 = vpop.permute.xlu0 %621
        %625 = vset.pattern.permute.xlu0 0
        %626 = vperm.xlu0 %625, %v458
        %v627 = vpop.permute.xlu0 %626
        %630 = vset.pattern.permute.xlu0 0
        %631 = vperm.xlu0 %630, %v463
        %v632 = vpop.permute.xlu0 %631
        %635 = vset.pattern.permute.xlu0 0
        %636 = vperm.xlu0 %635, %v468
        %v637 = vpop.permute.xlu0 %636
        %640 = vset.pattern.permute.xlu0 0
        %641 = vperm.xlu0 %640, %v473
        %v642 = vpop.permute.xlu0 %641
        %645 = vset.pattern.permute.xlu0 0
        %646 = vperm.xlu0 %645, %v478
        %v647 = vpop.permute.xlu0 %646
        %650 = vset.pattern.permute.xlu0 0
        %651 = vperm.xlu0 %650, %v483
        %v652 = vpop.permute.xlu0 %651
        %655 = vset.pattern.permute.xlu0 0
        %656 = vperm.xlu0 %655, %v488
        %v657 = vpop.permute.xlu0 %656
        %v659 = vadd.f32 %v491, %v622
        %v660 = vadd.f32 %v492, %v622
        %v661 = vadd.f32 %v493, %v622
        %v662 = vadd.f32 %v494, %v622
        %v663 = vadd.f32 %v495, %v622
        %v664 = vadd.f32 %v496, %v622
        %v665 = vadd.f32 %v497, %v622
        %v666 = vadd.f32 %v498, %v622
        %v667 = vadd.f32 %v499, %v622
        %v668 = vadd.f32 %v500, %v622
        %v669 = vadd.f32 %v501, %v622
        %v670 = vadd.f32 %v502, %v622
        %v671 = vadd.f32 %v503, %v622
        %v672 = vadd.f32 %v504, %v622
        %v673 = vadd.f32 %v505, %v622
        %v674 = vadd.f32 %v506, %v622
        %v675 = vadd.f32 %v507, %v627
        %v676 = vadd.f32 %v508, %v627
        %v677 = vadd.f32 %v509, %v627
        %v678 = vadd.f32 %v510, %v627
        %v679 = vadd.f32 %v511, %v627
        %v680 = vadd.f32 %v512, %v627
        %v681 = vadd.f32 %v513, %v627
        %v682 = vadd.f32 %v514, %v627
        %v683 = vadd.f32 %v515, %v627
        %v684 = vadd.f32 %v516, %v627
        %v685 = vadd.f32 %v517, %v627
        %v686 = vadd.f32 %v518, %v627
        %v687 = vadd.f32 %v519, %v627
        %v688 = vadd.f32 %v520, %v627
        %v689 = vadd.f32 %v521, %v627
        %v690 = vadd.f32 %v522, %v627
        %v691 = vadd.f32 %v523, %v632
        %v692 = vadd.f32 %v524, %v632
        %v693 = vadd.f32 %v525, %v632
        %v694 = vadd.f32 %v526, %v632
        %v695 = vadd.f32 %v527, %v632
        %v696 = vadd.f32 %v528, %v632
        %v697 = vadd.f32 %v529, %v632
        %v698 = vadd.f32 %v530, %v632
        %v699 = vadd.f32 %v531, %v632
        %v700 = vadd.f32 %v532, %v632
        %v701 = vadd.f32 %v533, %v632
        %v702 = vadd.f32 %v534, %v632
        %v703 = vadd.f32 %v535, %v632
        %v704 = vadd.f32 %v536, %v632
        %v705 = vadd.f32 %v537, %v632
        %v706 = vadd.f32 %v538, %v632
        %v707 = vadd.f32 %v539, %v637
        %v708 = vadd.f32 %v540, %v637
        %v709 = vadd.f32 %v541, %v637
        %v710 = vadd.f32 %v542, %v637
        %v711 = vadd.f32 %v543, %v637
        %v712 = vadd.f32 %v544, %v637
        %v713 = vadd.f32 %v545, %v637
        %v714 = vadd.f32 %v546, %v637
        %v715 = vadd.f32 %v547, %v637
        %v716 = vadd.f32 %v548, %v637
        %v717 = vadd.f32 %v549, %v637
        %v718 = vadd.f32 %v550, %v637
        %v719 = vadd.f32 %v551, %v637
        %v720 = vadd.f32 %v552, %v637
        %v721 = vadd.f32 %v553, %v637
        %v722 = vadd.f32 %v554, %v637
        %v723 = vadd.f32 %v555, %v642
        %v724 = vadd.f32 %v556, %v642
        %v725 = vadd.f32 %v557, %v642
        %v726 = vadd.f32 %v558, %v642
        %v727 = vadd.f32 %v559, %v642
        %v728 = vadd.f32 %v560, %v642
        %v729 = vadd.f32 %v561, %v642
        %v730 = vadd.f32 %v562, %v642
        %v731 = vadd.f32 %v563, %v642
        %v732 = vadd.f32 %v564, %v642
        %v733 = vadd.f32 %v565, %v642
        %v734 = vadd.f32 %v566, %v642
        %v735 = vadd.f32 %v567, %v642
        %v736 = vadd.f32 %v568, %v642
        %v737 = vadd.f32 %v569, %v642
        %v738 = vadd.f32 %v570, %v642
        %v739 = vadd.f32 %v571, %v647
        %v740 = vadd.f32 %v572, %v647
        %v741 = vadd.f32 %v573, %v647
        %v742 = vadd.f32 %v574, %v647
        %v743 = vadd.f32 %v575, %v647
        %v744 = vadd.f32 %v576, %v647
        %v745 = vadd.f32 %v577, %v647
        %v746 = vadd.f32 %v578, %v647
        %v747 = vadd.f32 %v579, %v647
        %v748 = vadd.f32 %v580, %v647
        %v749 = vadd.f32 %v581, %v647
        %v750 = vadd.f32 %v582, %v647
        %v751 = vadd.f32 %v583, %v647
        %v752 = vadd.f32 %v584, %v647
        %v753 = vadd.f32 %v585, %v647
        %v754 = vadd.f32 %v586, %v647
        %v755 = vadd.f32 %v587, %v652
        %v756 = vadd.f32 %v588, %v652
        %v757 = vadd.f32 %v589, %v652
        %v758 = vadd.f32 %v590, %v652
        %v759 = vadd.f32 %v591, %v652
        %v760 = vadd.f32 %v592, %v652
        %v761 = vadd.f32 %v593, %v652
        %v762 = vadd.f32 %v594, %v652
        %v763 = vadd.f32 %v595, %v652
        %v764 = vadd.f32 %v596, %v652
        %v765 = vadd.f32 %v597, %v652
        %v766 = vadd.f32 %v598, %v652
        %v767 = vadd.f32 %v599, %v652
        %v768 = vadd.f32 %v600, %v652
        %v769 = vadd.f32 %v601, %v652
        %v770 = vadd.f32 %v602, %v652
        %v771 = vadd.f32 %v603, %v657
        %v772 = vadd.f32 %v604, %v657
        %v773 = vadd.f32 %v605, %v657
        %v774 = vadd.f32 %v606, %v657
        %v775 = vadd.f32 %v607, %v657
        %v776 = vadd.f32 %v608, %v657
        %v777 = vadd.f32 %v609, %v657
        %v778 = vadd.f32 %v610, %v657
        %v779 = vadd.f32 %v611, %v657
        %v780 = vadd.f32 %v612, %v657
        %v781 = vadd.f32 %v613, %v657
        %v782 = vadd.f32 %v614, %v657
        %v783 = vadd.f32 %v615, %v657
        %v784 = vadd.f32 %v616, %v657
        %v785 = vadd.f32 %v617, %v657
        %v786 = vadd.f32 %v618, %v657
        %v787 = vmax.f32 %v659, 0.0
        %v788 = vmax.f32 %v660, 0.0
        %v789 = vmax.f32 %v661, 0.0
        %v790 = vmax.f32 %v662, 0.0
        %v791 = vmax.f32 %v663, 0.0
        %v792 = vmax.f32 %v664, 0.0
        %v793 = vmax.f32 %v665, 0.0
        %v794 = vmax.f32 %v666, 0.0
        %v795 = vmax.f32 %v667, 0.0
        %v796 = vmax.f32 %v668, 0.0
        %v797 = vmax.f32 %v669, 0.0
        %v798 = vmax.f32 %v670, 0.0
        %v799 = vmax.f32 %v671, 0.0
        %v800 = vmax.f32 %v672, 0.0
        %v801 = vmax.f32 %v673, 0.0
        %v802 = vmax.f32 %v674, 0.0
        %v803 = vmax.f32 %v675, 0.0
        %v804 = vmax.f32 %v676, 0.0
        %v805 = vmax.f32 %v677, 0.0
        %v806 = vmax.f32 %v678, 0.0
        %v807 = vmax.f32 %v679, 0.0
        %v808 = vmax.f32 %v680, 0.0
        %v809 = vmax.f32 %v681, 0.0
        %v810 = vmax.f32 %v682, 0.0
        %v811 = vmax.f32 %v683, 0.0
        %v812 = vmax.f32 %v684, 0.0
        %v813 = vmax.f32 %v685, 0.0
        %v814 = vmax.f32 %v686, 0.0
        %v815 = vmax.f32 %v687, 0.0
        %v816 = vmax.f32 %v688, 0.0
        %v817 = vmax.f32 %v689, 0.0
        %v818 = vmax.f32 %v690, 0.0
        %v819 = vmax.f32 %v691, 0.0
        %v820 = vmax.f32 %v692, 0.0
        %v821 = vmax.f32 %v693, 0.0
        %v822 = vmax.f32 %v694, 0.0
        %v823 = vmax.f32 %v695, 0.0
        %v824 = vmax.f32 %v696, 0.0
        %v825 = vmax.f32 %v697, 0.0
        %v826 = vmax.f32 %v698, 0.0
        %v827 = vmax.f32 %v699, 0.0
        %v828 = vmax.f32 %v700, 0.0
        %v829 = vmax.f32 %v701, 0.0
        %v830 = vmax.f32 %v702, 0.0
        %v831 = vmax.f32 %v703, 0.0
        %v832 = vmax.f32 %v704, 0.0
        %v833 = vmax.f32 %v705, 0.0
        %v834 = vmax.f32 %v706, 0.0
        %v835 = vmax.f32 %v707, 0.0
        %v836 = vmax.f32 %v708, 0.0
        %v837 = vmax.f32 %v709, 0.0
        %v838 = vmax.f32 %v710, 0.0
        %v839 = vmax.f32 %v711, 0.0
        %v840 = vmax.f32 %v712, 0.0
        %v841 = vmax.f32 %v713, 0.0
        %v842 = vmax.f32 %v714, 0.0
        %v843 = vmax.f32 %v715, 0.0
        %v844 = vmax.f32 %v716, 0.0
        %v845 = vmax.f32 %v717, 0.0
        %v846 = vmax.f32 %v718, 0.0
        %v847 = vmax.f32 %v719, 0.0
        %v848 = vmax.f32 %v720, 0.0
        %v849 = vmax.f32 %v721, 0.0
        %v850 = vmax.f32 %v722, 0.0
        %v851 = vmax.f32 %v723, 0.0
        %v852 = vmax.f32 %v724, 0.0
        %v853 = vmax.f32 %v725, 0.0
        %v854 = vmax.f32 %v726, 0.0
        %v855 = vmax.f32 %v727, 0.0
        %v856 = vmax.f32 %v728, 0.0
        %v857 = vmax.f32 %v729, 0.0
        %v858 = vmax.f32 %v730, 0.0
        %v859 = vmax.f32 %v731, 0.0
        %v860 = vmax.f32 %v732, 0.0
        %v861 = vmax.f32 %v733, 0.0
        %v862 = vmax.f32 %v734, 0.0
        %v863 = vmax.f32 %v735, 0.0
        %v864 = vmax.f32 %v736, 0.0
        %v865 = vmax.f32 %v737, 0.0
        %v866 = vmax.f32 %v738, 0.0
        %v867 = vmax.f32 %v739, 0.0
        %v868 = vmax.f32 %v740, 0.0
        %v869 = vmax.f32 %v741, 0.0
        %v870 = vmax.f32 %v742, 0.0
        %v871 = vmax.f32 %v743, 0.0
        %v872 = vmax.f32 %v744, 0.0
        %v873 = vmax.f32 %v745, 0.0
        %v874 = vmax.f32 %v746, 0.0
        %v875 = vmax.f32 %v747, 0.0
        %v876 = vmax.f32 %v748, 0.0
        %v877 = vmax.f32 %v749, 0.0
        %v878 = vmax.f32 %v750, 0.0
        %v879 = vmax.f32 %v751, 0.0
        %v880 = vmax.f32 %v752, 0.0
        %v881 = vmax.f32 %v753, 0.0
        %v882 = vmax.f32 %v754, 0.0
        %v883 = vmax.f32 %v755, 0.0
        %v884 = vmax.f32 %v756, 0.0
        %v885 = vmax.f32 %v757, 0.0
        %v886 = vmax.f32 %v758, 0.0
        %v887 = vmax.f32 %v759, 0.0
        %v888 = vmax.f32 %v760, 0.0
        %v889 = vmax.f32 %v761, 0.0
        %v890 = vmax.f32 %v762, 0.0
        %v891 = vmax.f32 %v763, 0.0
        %v892 = vmax.f32 %v764, 0.0
        %v893 = vmax.f32 %v765, 0.0
        %v894 = vmax.f32 %v766, 0.0
        %v895 = vmax.f32 %v767, 0.0
        %v896 = vmax.f32 %v768, 0.0
        %v897 = vmax.f32 %v769, 0.0
        %v898 = vmax.f32 %v770, 0.0
        %v899 = vmax.f32 %v771, 0.0
        %v900 = vmax.f32 %v772, 0.0
        %v901 = vmax.f32 %v773, 0.0
        %v902 = vmax.f32 %v774, 0.0
        %v903 = vmax.f32 %v775, 0.0
        %v904 = vmax.f32 %v776, 0.0
        %v905 = vmax.f32 %v777, 0.0
        %v906 = vmax.f32 %v778, 0.0
        %v907 = vmax.f32 %v779, 0.0
        %v908 = vmax.f32 %v780, 0.0
        %v909 = vmax.f32 %v781, 0.0
        %v910 = vmax.f32 %v782, 0.0
        %v911 = vmax.f32 %v783, 0.0
        %v912 = vmax.f32 %v784, 0.0
        %v913 = vmax.f32 %v785, 0.0
        %v914 = vmax.f32 %v786, 0.0
        %v915 = vld [vmem:[%s3] sm:$0xf]
        %v916 = vld [vmem:[%s3 + $0x4] sm:$0xf]
        %v917 = vld [vmem:[%s3 + $0x8] sm:$0xf]
        %v918 = vld [vmem:[%s3 + $0xc] sm:$0xf]
        %v919 = vld [vmem:[%s3 + $0x10] sm:$0xf]
        %v920 = vld [vmem:[%s3 + $0x14] sm:$0xf]
        %v921 = vld [vmem:[%s3 + $0x18] sm:$0xf]
        %v922 = vld [vmem:[%s3 + $0x1c] sm:$0xf]
        %v923 = vpack.c.bf16 %v803, %v787
        %v924 = vpack.c.bf16 %v804, %v788
        %v925 = vpack.c.bf16 %v805, %v789
        %v926 = vpack.c.bf16 %v806, %v790
        %v927 = vpack.c.bf16 %v807, %v791
        %v928 = vpack.c.bf16 %v808, %v792
        %v929 = vpack.c.bf16 %v809, %v793
        %v930 = vpack.c.bf16 %v810, %v794
        %v931 = vpack.c.bf16 %v811, %v795
        %v932 = vpack.c.bf16 %v812, %v796
        %v933 = vpack.c.bf16 %v813, %v797
        %v934 = vpack.c.bf16 %v814, %v798
        %v935 = vpack.c.bf16 %v815, %v799
        %v936 = vpack.c.bf16 %v816, %v800
        %v937 = vpack.c.bf16 %v817, %v801
        %v938 = vpack.c.bf16 %v818, %v802
        %v939 = vpack.c.bf16 %v835, %v819
        %v940 = vpack.c.bf16 %v836, %v820
        %v941 = vpack.c.bf16 %v837, %v821
        %v942 = vpack.c.bf16 %v838, %v822
        %v943 = vpack.c.bf16 %v839, %v823
        %v944 = vpack.c.bf16 %v840, %v824
        %v945 = vpack.c.bf16 %v841, %v825
        %v946 = vpack.c.bf16 %v842, %v826
        %v947 = vpack.c.bf16 %v843, %v827
        %v948 = vpack.c.bf16 %v844, %v828
        %v949 = vpack.c.bf16 %v845, %v829
        %v950 = vpack.c.bf16 %v846, %v830
        %v951 = vpack.c.bf16 %v847, %v831
        %v952 = vpack.c.bf16 %v848, %v832
        %v953 = vpack.c.bf16 %v849, %v833
        %v954 = vpack.c.bf16 %v850, %v834
        %v955 = vpack.c.bf16 %v867, %v851
        %v956 = vpack.c.bf16 %v868, %v852
        %v957 = vpack.c.bf16 %v869, %v853
        %v958 = vpack.c.bf16 %v870, %v854
        %v959 = vpack.c.bf16 %v871, %v855
        %v960 = vpack.c.bf16 %v872, %v856
        %v961 = vpack.c.bf16 %v873, %v857
        %v962 = vpack.c.bf16 %v874, %v858
        %v963 = vpack.c.bf16 %v875, %v859
        %v964 = vpack.c.bf16 %v876, %v860
        %v965 = vpack.c.bf16 %v877, %v861
        %v966 = vpack.c.bf16 %v878, %v862
        %v967 = vpack.c.bf16 %v879, %v863
        %v968 = vpack.c.bf16 %v880, %v864
        %v969 = vpack.c.bf16 %v881, %v865
        %v970 = vpack.c.bf16 %v882, %v866
        %v971 = vpack.c.bf16 %v899, %v883
        %v972 = vpack.c.bf16 %v900, %v884
        %v973 = vpack.c.bf16 %v901, %v885
        %v974 = vpack.c.bf16 %v902, %v886
        %v975 = vpack.c.bf16 %v903, %v887
        %v976 = vpack.c.bf16 %v904, %v888
        %v977 = vpack.c.bf16 %v905, %v889
        %v978 = vpack.c.bf16 %v906, %v890
        %v979 = vpack.c.bf16 %v907, %v891
        %v980 = vpack.c.bf16 %v908, %v892
        %v981 = vpack.c.bf16 %v909, %v893
        %v982 = vpack.c.bf16 %v910, %v894
        %v983 = vpack.c.bf16 %v911, %v895
        %v984 = vpack.c.bf16 %v912, %v896
        %v985 = vpack.c.bf16 %v913, %v897
        %v986 = vpack.c.bf16 %v914, %v898
        %v987 = vld [vmem:[%s4] sm:$0xff]
        %v988 = vld [vmem:[%s4 + $0x8] sm:$0xff]
        %v989 = vld [vmem:[%s4 + $0x10] sm:$0xff]
        %v990 = vld [vmem:[%s4 + $0x18] sm:$0xff]
        %v991 = vld [vmem:[%s4 + $0x20] sm:$0xff]
        %v992 = vld [vmem:[%s4 + $0x28] sm:$0xff]
        %v993 = vld [vmem:[%s4 + $0x30] sm:$0xff]
        %v994 = vld [vmem:[%s4 + $0x38] sm:$0xff]
        %996 = vset.pattern.permute.xlu0 0
        %997 = vperm.xlu0 %996, %v987
        %v998 = vpop.permute.xlu0 %997
        %1001 = vset.pattern.permute.xlu0 0
        %1002 = vperm.xlu0 %1001, %v988
        %v1003 = vpop.permute.xlu0 %1002
        %1006 = vset.pattern.permute.xlu0 0
        %1007 = vperm.xlu0 %1006, %v989
        %v1008 = vpop.permute.xlu0 %1007
        %1011 = vset.pattern.permute.xlu0 0
        %1012 = vperm.xlu0 %1011, %v990
        %v1013 = vpop.permute.xlu0 %1012
        %1016 = vset.pattern.permute.xlu0 0
        %1017 = vperm.xlu0 %1016, %v991
        %v1018 = vpop.permute.xlu0 %1017
        %1021 = vset.pattern.permute.xlu0 0
        %1022 = vperm.xlu0 %1021, %v992
        %v1023 = vpop.permute.xlu0 %1022
        %1026 = vset.pattern.permute.xlu0 0
        %1027 = vperm.xlu0 %1026, %v993
        %v1028 = vpop.permute.xlu0 %1027
        %1031 = vset.pattern.permute.xlu0 0
        %1032 = vperm.xlu0 %1031, %v994
        %v1033 = vpop.permute.xlu0 %1032
        %v1043 = vunpack.c.l.b16 %v915
        %v1044 = vunpack.c.l.b16 %v916
        %v1045 = vunpack.c.l.b16 %v917
        %v1046 = vunpack.c.l.b16 %v918
        %v1047 = vunpack.c.l.b16 %v919
        %v1048 = vunpack.c.l.b16 %v920
        %v1049 = vunpack.c.l.b16 %v921
        %v1050 = vunpack.c.l.b16 %v922
        %v1051 = vpack.c.b16 %v1044, %v1043
        %v1052 = vpack.c.b16 %v1046, %v1045
        %v1053 = vpack.c.b16 %v1048, %v1047
        %v1054 = vpack.c.b16 %v1050, %v1049
        %vm1055 = vcmask 523264
        %v1057 = vsel %vm1055, %v1051, 0
        %v1060 = vsel %vm1055, %v1052, 0
        %v1063 = vsel %vm1055, %v1053, 0
        %v1066 = vsel %vm1055, %v1054, 0
        %1068 = vmatprep.subr.bf16.mxu0 %v924
        %1069 = vmatpush1.bf16.msra.mxu0 %v923
        %1070 = vmatprep.subr.bf16.mxu0 %v940
        %1071 = vmatpush1.bf16.msra.mxu0 %v939
        %1072 = vmatprep.subr.bf16.mxu0 %v956
        %1073 = vmatpush1.bf16.msra.mxu0 %v955
        %1074 = vmatprep.subr.bf16.mxu0 %v972
        %1075 = vmatpush1.bf16.msra.mxu0 %v971
        %1076 = vmatprep.subr.bf16.mxu0 0
        %1077 = vmatpush1.bf16.msra.mxu0 0
        %1078 = vmatprep.subr.bf16.mxu0 0
        %1079 = vmatpush1.bf16.msra.mxu0 0
        %1080 = vmatprep.subr.bf16.mxu0 0
        %1081 = vmatpush1.bf16.msra.mxu0 0
        %1082 = vmatprep.subr.bf16.mxu0 0
        %1083 = vmatpush1.bf16.msra.mxu0 0
        %1084 = vmatprep.subr.bf16.mxu0 0
        %1085 = vmatpush1.bf16.msra.mxu0 0
        %1086 = vmatprep.subr.bf16.mxu0 0
        %1087 = vmatpush1.bf16.msra.mxu0 0
        %1088 = vmatprep.subr.bf16.mxu0 0
        %1089 = vmatpush1.bf16.msra.mxu0 0
        %1090 = vmatprep.subr.bf16.mxu0 0
        %1091 = vmatpush1.bf16.msra.mxu0 0
        %1092 = vmatprep.subr.bf16.mxu0 0
        %1093 = vmatpush1.bf16.msra.mxu0 0
        %1094 = vmatprep.subr.bf16.mxu0 0
        %1095 = vmatpush1.bf16.msra.mxu0 0
        %1096 = vmatprep.subr.bf16.mxu0 0
        %1097 = vmatpush1.bf16.msra.mxu0 0
        %1098 = vmatprep.subr.bf16.mxu0 0
        %1099 = vmatpush1.bf16.msra.mxu0 0
        %1100 = vmatprep.mubr.bf16.mxu0 0
        %1101 = vmatmul.mubr.bf16.gmra.mrb[0].mxu0 %v1057
        %v1102 = vpop.f32.mrb[0].mxu0
        %v1103 = vadd.f32 %v998, %v1102
        %v1104 = vpop.f32.mrb[0].mxu0
        %v1105 = vadd.f32 %v998, %v1104
        %v1106 = vpop.f32.mrb[0].mxu0
        %v1107 = vadd.f32 %v1003, %v1106
        %v1108 = vpop.f32.mrb[0].mxu0
        %v1109 = vadd.f32 %v1003, %v1108
        %1110 = vmatprep.mubr.bf16.mxu0 0
        %1111 = vmatmul.mubr.bf16.gmra.mrb[0].mxu0 %v1060
        %v1112 = vpop.f32.mrb[0].mxu0
        %v1113 = vadd.f32 %v1008, %v1112
        %v1114 = vpop.f32.mrb[0].mxu0
        %v1115 = vadd.f32 %v1008, %v1114
        %v1116 = vpop.f32.mrb[0].mxu0
        %v1117 = vadd.f32 %v1013, %v1116
        %v1118 = vpop.f32.mrb[0].mxu0
        %v1119 = vadd.f32 %v1013, %v1118
        %1120 = vmatprep.mubr.bf16.mxu0 0
        %1121 = vmatmul.mubr.bf16.gmra.mrb[0].mxu0 %v1063
        %v1122 = vpop.f32.mrb[0].mxu0
        %v1123 = vadd.f32 %v1018, %v1122
        %v1124 = vpop.f32.mrb[0].mxu0
        %v1125 = vadd.f32 %v1018, %v1124
        %v1126 = vpop.f32.mrb[0].mxu0
        %v1127 = vadd.f32 %v1023, %v1126
        %v1128 = vpop.f32.mrb[0].mxu0
        %v1129 = vadd.f32 %v1023, %v1128
        %1130 = vmatprep.mubr.bf16.mxu0 0
        %1131 = vmatmul.mubr.bf16.gmra.mrb[0].mxu0 %v1066
        %v1132 = vpop.f32.mrb[0].mxu0
        %v1133 = vadd.f32 %v1028, %v1132
        %v1134 = vpop.f32.mrb[0].mxu0
        %v1135 = vadd.f32 %v1028, %v1134
        %v1136 = vpop.f32.mrb[0].mxu0
        %v1137 = vadd.f32 %v1033, %v1136
        %v1138 = vpop.f32.mrb[0].mxu0
        %v1139 = vadd.f32 %v1033, %v1138
        %1140 = vdwg.mxu0
        %1141 = vmatprep.subr.bf16.mxu0 %v926
        %1142 = vmatpush1.bf16.msra.mxu0 %v925
        %1143 = vmatprep.subr.bf16.mxu0 %v942
        %1144 = vmatpush1.bf16.msra.mxu0 %v941
        %1145 = vmatprep.subr.bf16.mxu0 %v958
        %1146 = vmatpush1.bf16.msra.mxu0 %v957
        %1147 = vmatprep.subr.bf16.mxu0 %v974
        %1148 = vmatpush1.bf16.msra.mxu0 %v973
        %1149 = vmatprep.subr.bf16.mxu0 0
        %1150 = vmatpush1.bf16.msra.mxu0 0
        %1151 = vmatprep.subr.bf16.mxu0 0
        %1152 = vmatpush1.bf16.msra.mxu0 0
        %1153 = vmatprep.subr.bf16.mxu0 0
        %1154 = vmatpush1.bf16.msra.mxu0 0
        %1155 = vmatprep.subr.bf16.mxu0 0
        %1156 = vmatpush1.bf16.msra.mxu0 0
        %1157 = vmatprep.subr.bf16.mxu0 0
        %1158 = vmatpush1.bf16.msra.mxu0 0
        %1159 = vmatprep.subr.bf16.mxu0 0
        %1160 = vmatpush1.bf16.msra.mxu0 0
        %1161 = vmatprep.subr.bf16.mxu0 0
        %1162 = vmatpush1.bf16.msra.mxu0 0
        %1163 = vmatprep.subr.bf16.mxu0 0
        %1164 = vmatpush1.bf16.msra.mxu0 0
        %1165 = vmatprep.subr.bf16.mxu0 0
        %1166 = vmatpush1.bf16.msra.mxu0 0
        %1167 = vmatprep.subr.bf16.mxu0 0
        %1168 = vmatpush1.bf16.msra.mxu0 0
        %1169 = vmatprep.subr.bf16.mxu0 0
        %1170 = vmatpush1.bf16.msra.mxu0 0
        %1171 = vmatprep.subr.bf16.mxu0 0
        %1172 = vmatpush1.bf16.msra.mxu0 0
        %1173 = vmatprep.mubr.bf16.mxu0 0
        %1174 = vmatmul.mubr.bf16.gmra.mrb[0].mxu0 %v1057
        %v1175 = vpop.f32.mrb[0].mxu0
        %v1176 = vadd.f32 %v998, %v1175
        %v1177 = vpop.f32.mrb[0].mxu0
        %v1178 = vadd.f32 %v998, %v1177
        %v1179 = vpop.f32.mrb[0].mxu0
        %v1180 = vadd.f32 %v1003, %v1179
        %v1181 = vpop.f32.mrb[0].mxu0
        %v1182 = vadd.f32 %v1003, %v1181
        %1183 = vmatprep.mubr.bf16.mxu0 0
        %1184 = vmatmul.mubr.bf16.gmra.mrb[0].mxu0 %v1060
        %v1185 = vpop.f32.mrb[0].mxu0
        %v1186 = vadd.f32 %v1008, %v1185
        %v1187 = vpop.f32.mrb[0].mxu0
        %v1188 = vadd.f32 %v1008, %v1187
        %v1189 = vpop.f32.mrb[0].mxu0
        %v1190 = vadd.f32 %v1013, %v1189
        %v1191 = vpop.f32.mrb[0].mxu0
        %v1192 = vadd.f32 %v1013, %v1191
        %1193 = vmatprep.mubr.bf16.mxu0 0
        %1194 = vmatmul.mubr.bf16.gmra.mrb[0].mxu0 %v1063
        %v1195 = vpop.f32.mrb[0].mxu0
        %v1196 = vadd.f32 %v1018, %v1195
        %v1197 = vpop.f32.mrb[0].mxu0
        %v1198 = vadd.f32 %v1018, %v1197
        %v1199 = vpop.f32.mrb[0].mxu0
        %v1200 = vadd.f32 %v1023, %v1199
        %v1201 = vpop.f32.mrb[0].mxu0
        %v1202 = vadd.f32 %v1023, %v1201
        %1203 = vmatprep.mubr.bf16.mxu0 0
        %1204 = vmatmul.mubr.bf16.gmra.mrb[0].mxu0 %v1066
        %v1205 = vpop.f32.mrb[0].mxu0
        %v1206 = vadd.f32 %v1028, %v1205
        %v1207 = vpop.f32.mrb[0].mxu0
        %v1208 = vadd.f32 %v1028, %v1207
        %v1209 = vpop.f32.mrb[0].mxu0
        %v1210 = vadd.f32 %v1033, %v1209
        %v1211 = vpop.f32.mrb[0].mxu0
        %v1212 = vadd.f32 %v1033, %v1211
        %1213 = vdwg.mxu0
        %1214 = vmatprep.subr.bf16.mxu0 %v928
        %1215 = vmatpush1.bf16.msra.mxu0 %v927
        %1216 = vmatprep.subr.bf16.mxu0 %v944
        %1217 = vmatpush1.bf16.msra.mxu0 %v943
        %1218 = vmatprep.subr.bf16.mxu0 %v960
        %1219 = vmatpush1.bf16.msra.mxu0 %v959
        %1220 = vmatprep.subr.bf16.mxu0 %v976
        %1221 = vmatpush1.bf16.msra.mxu0 %v975
        %1222 = vmatprep.subr.bf16.mxu0 0
        %1223 = vmatpush1.bf16.msra.mxu0 0
        %1224 = vmatprep.subr.bf16.mxu0 0
        %1225 = vmatpush1.bf16.msra.mxu0 0
        %1226 = vmatprep.subr.bf16.mxu0 0
        %1227 = vmatpush1.bf16.msra.mxu0 0
        %1228 = vmatprep.subr.bf16.mxu0 0
        %1229 = vmatpush1.bf16.msra.mxu0 0
        %1230 = vmatprep.subr.bf16.mxu0 0
        %1231 = vmatpush1.bf16.msra.mxu0 0
        %1232 = vmatprep.subr.bf16.mxu0 0
        %1233 = vmatpush1.bf16.msra.mxu0 0
        %1234 = vmatprep.subr.bf16.mxu0 0
        %1235 = vmatpush1.bf16.msra.mxu0 0
        %1236 = vmatprep.subr.bf16.mxu0 0
        %1237 = vmatpush1.bf16.msra.mxu0 0
        %1238 = vmatprep.subr.bf16.mxu0 0
        %1239 = vmatpush1.bf16.msra.mxu0 0
        %1240 = vmatprep.subr.bf16.mxu0 0
        %1241 = vmatpush1.bf16.msra.mxu0 0
        %1242 = vmatprep.subr.bf16.mxu0 0
        %1243 = vmatpush1.bf16.msra.mxu0 0
        %1244 = vmatprep.subr.bf16.mxu0 0
        %1245 = vmatpush1.bf16.msra.mxu0 0
        %1246 = vmatprep.mubr.bf16.mxu0 0
        %1247 = vmatmul.mubr.bf16.gmra.mrb[0].mxu0 %v1057
        %v1248 = vpop.f32.mrb[0].mxu0
        %v1249 = vadd.f32 %v998, %v1248
        %v1250 = vpop.f32.mrb[0].mxu0
        %v1251 = vadd.f32 %v998, %v1250
        %v1252 = vpop.f32.mrb[0].mxu0
        %v1253 = vadd.f32 %v1003, %v1252
        %v1254 = vpop.f32.mrb[0].mxu0
        %v1255 = vadd.f32 %v1003, %v1254
        %1256 = vmatprep.mubr.bf16.mxu0 0
        %1257 = vmatmul.mubr.bf16.gmra.mrb[0].mxu0 %v1060
        %v1258 = vpop.f32.mrb[0].mxu0
        %v1259 = vadd.f32 %v1008, %v1258
        %v1260 = vpop.f32.mrb[0].mxu0
        %v1261 = vadd.f32 %v1008, %v1260
        %v1262 = vpop.f32.mrb[0].mxu0
        %v1263 = vadd.f32 %v1013, %v1262
        %v1264 = vpop.f32.mrb[0].mxu0
        %v1265 = vadd.f32 %v1013, %v1264
        %1266 = vmatprep.mubr.bf16.mxu0 0
        %1267 = vmatmul.mubr.bf16.gmra.mrb[0].mxu0 %v1063
        %v1268 = vpop.f32.mrb[0].mxu0
        %v1269 = vadd.f32 %v1018, %v1268
        %v1270 = vpop.f32.mrb[0].mxu0
        %v1271 = vadd.f32 %v1018, %v1270
        %v1272 = vpop.f32.mrb[0].mxu0
        %v1273 = vadd.f32 %v1023, %v1272
        %v1274 = vpop.f32.mrb[0].mxu0
        %v1275 = vadd.f32 %v1023, %v1274
        %1276 = vmatprep.mubr.bf16.mxu0 0
        %1277 = vmatmul.mubr.bf16.gmra.mrb[0].mxu0 %v1066
        %v1278 = vpop.f32.mrb[0].mxu0
        %v1279 = vadd.f32 %v1028, %v1278
        %v1280 = vpop.f32.mrb[0].mxu0
        %v1281 = vadd.f32 %v1028, %v1280
        %v1282 = vpop.f32.mrb[0].mxu0
        %v1283 = vadd.f32 %v1033, %v1282
        %v1284 = vpop.f32.mrb[0].mxu0
        %v1285 = vadd.f32 %v1033, %v1284
        %1286 = vdwg.mxu0
        %1287 = vmatprep.subr.bf16.mxu0 %v930
        %1288 = vmatpush1.bf16.msra.mxu0 %v929
        %1289 = vmatprep.subr.bf16.mxu0 %v946
        %1290 = vmatpush1.bf16.msra.mxu0 %v945
        %1291 = vmatprep.subr.bf16.mxu0 %v962
        %1292 = vmatpush1.bf16.msra.mxu0 %v961
        %1293 = vmatprep.subr.bf16.mxu0 %v978
        %1294 = vmatpush1.bf16.msra.mxu0 %v977
        %1295 = vmatprep.subr.bf16.mxu0 0
        %1296 = vmatpush1.bf16.msra.mxu0 0
        %1297 = vmatprep.subr.bf16.mxu0 0
        %1298 = vmatpush1.bf16.msra.mxu0 0
        %1299 = vmatprep.subr.bf16.mxu0 0
        %1300 = vmatpush1.bf16.msra.mxu0 0
        %1301 = vmatprep.subr.bf16.mxu0 0
        %1302 = vmatpush1.bf16.msra.mxu0 0
        %1303 = vmatprep.subr.bf16.mxu0 0
        %1304 = vmatpush1.bf16.msra.mxu0 0
        %1305 = vmatprep.subr.bf16.mxu0 0
        %1306 = vmatpush1.bf16.msra.mxu0 0
        %1307 = vmatprep.subr.bf16.mxu0 0
        %1308 = vmatpush1.bf16.msra.mxu0 0
        %1309 = vmatprep.subr.bf16.mxu0 0
        %1310 = vmatpush1.bf16.msra.mxu0 0
        %1311 = vmatprep.subr.bf16.mxu0 0
        %1312 = vmatpush1.bf16.msra.mxu0 0
        %1313 = vmatprep.subr.bf16.mxu0 0
        %1314 = vmatpush1.bf16.msra.mxu0 0
        %1315 = vmatprep.subr.bf16.mxu0 0
        %1316 = vmatpush1.bf16.msra.mxu0 0
        %1317 = vmatprep.subr.bf16.mxu0 0
        %1318 = vmatpush1.bf16.msra.mxu0 0
        %1319 = vmatprep.mubr.bf16.mxu0 0
        %1320 = vmatmul.mubr.bf16.gmra.mrb[0].mxu0 %v1057
        %v1321 = vpop.f32.mrb[0].mxu0
        %v1322 = vadd.f32 %v998, %v1321
        %v1323 = vpop.f32.mrb[0].mxu0
        %v1324 = vadd.f32 %v998, %v1323
        %v1325 = vpop.f32.mrb[0].mxu0
        %v1326 = vadd.f32 %v1003, %v1325
        %v1327 = vpop.f32.mrb[0].mxu0
        %v1328 = vadd.f32 %v1003, %v1327
        %1329 = vmatprep.mubr.bf16.mxu0 0
        %1330 = vmatmul.mubr.bf16.gmra.mrb[0].mxu0 %v1060
        %v1331 = vpop.f32.mrb[0].mxu0
        %v1332 = vadd.f32 %v1008, %v1331
        %v1333 = vpop.f32.mrb[0].mxu0
        %v1334 = vadd.f32 %v1008, %v1333
        %v1335 = vpop.f32.mrb[0].mxu0
        %v1336 = vadd.f32 %v1013, %v1335
        %v1337 = vpop.f32.mrb[0].mxu0
        %v1338 = vadd.f32 %v1013, %v1337
        %1339 = vmatprep.mubr.bf16.mxu0 0
        %1340 = vmatmul.mubr.bf16.gmra.mrb[0].mxu0 %v1063
        %v1341 = vpop.f32.mrb[0].mxu0
        %v1342 = vadd.f32 %v1018, %v1341
        %v1343 = vpop.f32.mrb[0].mxu0
        %v1344 = vadd.f32 %v1018, %v1343
        %v1345 = vpop.f32.mrb[0].mxu0
        %v1346 = vadd.f32 %v1023, %v1345
        %v1347 = vpop.f32.mrb[0].mxu0
        %v1348 = vadd.f32 %v1023, %v1347
        %1349 = vmatprep.mubr.bf16.mxu0 0
        %1350 = vmatmul.mubr.bf16.gmra.mrb[0].mxu0 %v1066
        %v1351 = vpop.f32.mrb[0].mxu0
        %v1352 = vadd.f32 %v1028, %v1351
        %v1353 = vpop.f32.mrb[0].mxu0
        %v1354 = vadd.f32 %v1028, %v1353
        %v1355 = vpop.f32.mrb[0].mxu0
        %v1356 = vadd.f32 %v1033, %v1355
        %v1357 = vpop.f32.mrb[0].mxu0
        %v1358 = vadd.f32 %v1033, %v1357
        %1359 = vdwg.mxu0
        %1360 = vmatprep.subr.bf16.mxu0 %v932
        %1361 = vmatpush1.bf16.msra.mxu0 %v931
        %1362 = vmatprep.subr.bf16.mxu0 %v948
        %1363 = vmatpush1.bf16.msra.mxu0 %v947
        %1364 = vmatprep.subr.bf16.mxu0 %v964
        %1365 = vmatpush1.bf16.msra.mxu0 %v963
        %1366 = vmatprep.subr.bf16.mxu0 %v980
        %1367 = vmatpush1.bf16.msra.mxu0 %v979
        %1368 = vmatprep.subr.bf16.mxu0 0
        %1369 = vmatpush1.bf16.msra.mxu0 0
        %1370 = vmatprep.subr.bf16.mxu0 0
        %1371 = vmatpush1.bf16.msra.mxu0 0
        %1372 = vmatprep.subr.bf16.mxu0 0
        %1373 = vmatpush1.bf16.msra.mxu0 0
        %1374 = vmatprep.subr.bf16.mxu0 0
        %1375 = vmatpush1.bf16.msra.mxu0 0
        %1376 = vmatprep.subr.bf16.mxu0 0
        %1377 = vmatpush1.bf16.msra.mxu0 0
        %1378 = vmatprep.subr.bf16.mxu0 0
        %1379 = vmatpush1.bf16.msra.mxu0 0
        %1380 = vmatprep.subr.bf16.mxu0 0
        %1381 = vmatpush1.bf16.msra.mxu0 0
        %1382 = vmatprep.subr.bf16.mxu0 0
        %1383 = vmatpush1.bf16.msra.mxu0 0
        %1384 = vmatprep.subr.bf16.mxu0 0
        %1385 = vmatpush1.bf16.msra.mxu0 0
        %1386 = vmatprep.subr.bf16.mxu0 0
        %1387 = vmatpush1.bf16.msra.mxu0 0
        %1388 = vmatprep.subr.bf16.mxu0 0
        %1389 = vmatpush1.bf16.msra.mxu0 0
        %1390 = vmatprep.subr.bf16.mxu0 0
        %1391 = vmatpush1.bf16.msra.mxu0 0
        %1392 = vmatprep.mubr.bf16.mxu0 0
        %1393 = vmatmul.mubr.bf16.gmra.mrb[0].mxu0 %v1057
        %v1394 = vpop.f32.mrb[0].mxu0
        %v1395 = vadd.f32 %v998, %v1394
        %v1396 = vpop.f32.mrb[0].mxu0
        %v1397 = vadd.f32 %v998, %v1396
        %v1398 = vpop.f32.mrb[0].mxu0
        %v1399 = vadd.f32 %v1003, %v1398
        %v1400 = vpop.f32.mrb[0].mxu0
        %v1401 = vadd.f32 %v1003, %v1400
        %1402 = vmatprep.mubr.bf16.mxu0 0
        %1403 = vmatmul.mubr.bf16.gmra.mrb[0].mxu0 %v1060
        %v1404 = vpop.f32.mrb[0].mxu0
        %v1405 = vadd.f32 %v1008, %v1404
        %v1406 = vpop.f32.mrb[0].mxu0
        %v1407 = vadd.f32 %v1008, %v1406
        %v1408 = vpop.f32.mrb[0].mxu0
        %v1409 = vadd.f32 %v1013, %v1408
        %v1410 = vpop.f32.mrb[0].mxu0
        %v1411 = vadd.f32 %v1013, %v1410
        %1412 = vmatprep.mubr.bf16.mxu0 0
        %1413 = vmatmul.mubr.bf16.gmra.mrb[0].mxu0 %v1063
        %v1414 = vpop.f32.mrb[0].mxu0
        %v1415 = vadd.f32 %v1018, %v1414
        %v1416 = vpop.f32.mrb[0].mxu0
        %v1417 = vadd.f32 %v1018, %v1416
        %v1418 = vpop.f32.mrb[0].mxu0
        %v1419 = vadd.f32 %v1023, %v1418
        %v1420 = vpop.f32.mrb[0].mxu0
        %v1421 = vadd.f32 %v1023, %v1420
        %1422 = vmatprep.mubr.bf16.mxu0 0
        %1423 = vmatmul.mubr.bf16.gmra.mrb[0].mxu0 %v1066
        %v1424 = vpop.f32.mrb[0].mxu0
        %v1425 = vadd.f32 %v1028, %v1424
        %v1426 = vpop.f32.mrb[0].mxu0
        %v1427 = vadd.f32 %v1028, %v1426
        %v1428 = vpop.f32.mrb[0].mxu0
        %v1429 = vadd.f32 %v1033, %v1428
        %v1430 = vpop.f32.mrb[0].mxu0
        %v1431 = vadd.f32 %v1033, %v1430
        %1432 = vdwg.mxu0
        %1433 = vmatprep.subr.bf16.mxu0 %v934
        %1434 = vmatpush1.bf16.msra.mxu0 %v933
        %1435 = vmatprep.subr.bf16.mxu0 %v950
        %1436 = vmatpush1.bf16.msra.mxu0 %v949
        %1437 = vmatprep.subr.bf16.mxu0 %v966
        %1438 = vmatpush1.bf16.msra.mxu0 %v965
        %1439 = vmatprep.subr.bf16.mxu0 %v982
        %1440 = vmatpush1.bf16.msra.mxu0 %v981
        %1441 = vmatprep.subr.bf16.mxu0 0
        %1442 = vmatpush1.bf16.msra.mxu0 0
        %1443 = vmatprep.subr.bf16.mxu0 0
        %1444 = vmatpush1.bf16.msra.mxu0 0
        %1445 = vmatprep.subr.bf16.mxu0 0
        %1446 = vmatpush1.bf16.msra.mxu0 0
        %1447 = vmatprep.subr.bf16.mxu0 0
        %1448 = vmatpush1.bf16.msra.mxu0 0
        %1449 = vmatprep.subr.bf16.mxu0 0
        %1450 = vmatpush1.bf16.msra.mxu0 0
        %1451 = vmatprep.subr.bf16.mxu0 0
        %1452 = vmatpush1.bf16.msra.mxu0 0
        %1453 = vmatprep.subr.bf16.mxu0 0
        %1454 = vmatpush1.bf16.msra.mxu0 0
        %1455 = vmatprep.subr.bf16.mxu0 0
        %1456 = vmatpush1.bf16.msra.mxu0 0
        %1457 = vmatprep.subr.bf16.mxu0 0
        %1458 = vmatpush1.bf16.msra.mxu0 0
        %1459 = vmatprep.subr.bf16.mxu0 0
        %1460 = vmatpush1.bf16.msra.mxu0 0
        %1461 = vmatprep.subr.bf16.mxu0 0
        %1462 = vmatpush1.bf16.msra.mxu0 0
        %1463 = vmatprep.subr.bf16.mxu0 0
        %1464 = vmatpush1.bf16.msra.mxu0 0
        %1465 = vmatprep.mubr.bf16.mxu0 0
        %1466 = vmatmul.mubr.bf16.gmra.mrb[0].mxu0 %v1057
        %v1467 = vpop.f32.mrb[0].mxu0
        %v1468 = vadd.f32 %v998, %v1467
        %v1469 = vpop.f32.mrb[0].mxu0
        %v1470 = vadd.f32 %v998, %v1469
        %v1471 = vpop.f32.mrb[0].mxu0
        %v1472 = vadd.f32 %v1003, %v1471
        %v1473 = vpop.f32.mrb[0].mxu0
        %v1474 = vadd.f32 %v1003, %v1473
        %1475 = vmatprep.mubr.bf16.mxu0 0
        %1476 = vmatmul.mubr.bf16.gmra.mrb[0].mxu0 %v1060
        %v1477 = vpop.f32.mrb[0].mxu0
        %v1478 = vadd.f32 %v1008, %v1477
        %v1479 = vpop.f32.mrb[0].mxu0
        %v1480 = vadd.f32 %v1008, %v1479
        %v1481 = vpop.f32.mrb[0].mxu0
        %v1482 = vadd.f32 %v1013, %v1481
        %v1483 = vpop.f32.mrb[0].mxu0
        %v1484 = vadd.f32 %v1013, %v1483
        %1485 = vmatprep.mubr.bf16.mxu0 0
        %1486 = vmatmul.mubr.bf16.gmra.mrb[0].mxu0 %v1063
        %v1487 = vpop.f32.mrb[0].mxu0
        %v1488 = vadd.f32 %v1018, %v1487
        %v1489 = vpop.f32.mrb[0].mxu0
        %v1490 = vadd.f32 %v1018, %v1489
        %v1491 = vpop.f32.mrb[0].mxu0
        %v1492 = vadd.f32 %v1023, %v1491
        %v1493 = vpop.f32.mrb[0].mxu0
        %v1494 = vadd.f32 %v1023, %v1493
        %1495 = vmatprep.mubr.bf16.mxu0 0
        %1496 = vmatmul.mubr.bf16.gmra.mrb[0].mxu0 %v1066
        %v1497 = vpop.f32.mrb[0].mxu0
        %v1498 = vadd.f32 %v1028, %v1497
        %v1499 = vpop.f32.mrb[0].mxu0
        %v1500 = vadd.f32 %v1028, %v1499
        %v1501 = vpop.f32.mrb[0].mxu0
        %v1502 = vadd.f32 %v1033, %v1501
        %v1503 = vpop.f32.mrb[0].mxu0
        %v1504 = vadd.f32 %v1033, %v1503
        %1505 = vdwg.mxu0
        %1506 = vmatprep.subr.bf16.mxu0 %v936
        %1507 = vmatpush1.bf16.msra.mxu0 %v935
        %1508 = vmatprep.subr.bf16.mxu0 %v952
        %1509 = vmatpush1.bf16.msra.mxu0 %v951
        %1510 = vmatprep.subr.bf16.mxu0 %v968
        %1511 = vmatpush1.bf16.msra.mxu0 %v967
        %1512 = vmatprep.subr.bf16.mxu0 %v984
        %1513 = vmatpush1.bf16.msra.mxu0 %v983
        %1514 = vmatprep.subr.bf16.mxu0 0
        %1515 = vmatpush1.bf16.msra.mxu0 0
        %1516 = vmatprep.subr.bf16.mxu0 0
        %1517 = vmatpush1.bf16.msra.mxu0 0
        %1518 = vmatprep.subr.bf16.mxu0 0
        %1519 = vmatpush1.bf16.msra.mxu0 0
        %1520 = vmatprep.subr.bf16.mxu0 0
        %1521 = vmatpush1.bf16.msra.mxu0 0
        %1522 = vmatprep.subr.bf16.mxu0 0
        %1523 = vmatpush1.bf16.msra.mxu0 0
        %1524 = vmatprep.subr.bf16.mxu0 0
        %1525 = vmatpush1.bf16.msra.mxu0 0
        %1526 = vmatprep.subr.bf16.mxu0 0
        %1527 = vmatpush1.bf16.msra.mxu0 0
        %1528 = vmatprep.subr.bf16.mxu0 0
        %1529 = vmatpush1.bf16.msra.mxu0 0
        %1530 = vmatprep.subr.bf16.mxu0 0
        %1531 = vmatpush1.bf16.msra.mxu0 0
        %1532 = vmatprep.subr.bf16.mxu0 0
        %1533 = vmatpush1.bf16.msra.mxu0 0
        %1534 = vmatprep.subr.bf16.mxu0 0
        %1535 = vmatpush1.bf16.msra.mxu0 0
        %1536 = vmatprep.subr.bf16.mxu0 0
        %1537 = vmatpush1.bf16.msra.mxu0 0
        %1538 = vmatprep.mubr.bf16.mxu0 0
        %1539 = vmatmul.mubr.bf16.gmra.mrb[0].mxu0 %v1057
        %v1540 = vpop.f32.mrb[0].mxu0
        %v1541 = vadd.f32 %v998, %v1540
        %v1542 = vpop.f32.mrb[0].mxu0
        %v1543 = vadd.f32 %v998, %v1542
        %v1544 = vpop.f32.mrb[0].mxu0
        %v1545 = vadd.f32 %v1003, %v1544
        %v1546 = vpop.f32.mrb[0].mxu0
        %v1547 = vadd.f32 %v1003, %v1546
        %1548 = vmatprep.mubr.bf16.mxu0 0
        %1549 = vmatmul.mubr.bf16.gmra.mrb[0].mxu0 %v1060
        %v1550 = vpop.f32.mrb[0].mxu0
        %v1551 = vadd.f32 %v1008, %v1550
        %v1552 = vpop.f32.mrb[0].mxu0
        %v1553 = vadd.f32 %v1008, %v1552
        %v1554 = vpop.f32.mrb[0].mxu0
        %v1555 = vadd.f32 %v1013, %v1554
        %v1556 = vpop.f32.mrb[0].mxu0
        %v1557 = vadd.f32 %v1013, %v1556
        %1558 = vmatprep.mubr.bf16.mxu0 0
        %1559 = vmatmul.mubr.bf16.gmra.mrb[0].mxu0 %v1063
        %v1560 = vpop.f32.mrb[0].mxu0
        %v1561 = vadd.f32 %v1018, %v1560
        %v1562 = vpop.f32.mrb[0].mxu0
        %v1563 = vadd.f32 %v1018, %v1562
        %v1564 = vpop.f32.mrb[0].mxu0
        %v1565 = vadd.f32 %v1023, %v1564
        %v1566 = vpop.f32.mrb[0].mxu0
        %v1567 = vadd.f32 %v1023, %v1566
        %1568 = vmatprep.mubr.bf16.mxu0 0
        %1569 = vmatmul.mubr.bf16.gmra.mrb[0].mxu0 %v1066
        %v1570 = vpop.f32.mrb[0].mxu0
        %v1571 = vadd.f32 %v1028, %v1570
        %v1572 = vpop.f32.mrb[0].mxu0
        %v1573 = vadd.f32 %v1028, %v1572
        %v1574 = vpop.f32.mrb[0].mxu0
        %v1575 = vadd.f32 %v1033, %v1574
        %v1576 = vpop.f32.mrb[0].mxu0
        %v1577 = vadd.f32 %v1033, %v1576
        %1578 = vdwg.mxu0
        %1579 = vmatprep.subr.bf16.mxu0 %v938
        %1580 = vmatpush1.bf16.msra.mxu0 %v937
        %1581 = vmatprep.subr.bf16.mxu0 %v954
        %1582 = vmatpush1.bf16.msra.mxu0 %v953
        %1583 = vmatprep.subr.bf16.mxu0 %v970
        %1584 = vmatpush1.bf16.msra.mxu0 %v969
        %1585 = vmatprep.subr.bf16.mxu0 %v986
        %1586 = vmatpush1.bf16.msra.mxu0 %v985
        %1587 = vmatprep.subr.bf16.mxu0 0
        %1588 = vmatpush1.bf16.msra.mxu0 0
        %1589 = vmatprep.subr.bf16.mxu0 0
        %1590 = vmatpush1.bf16.msra.mxu0 0
        %1591 = vmatprep.subr.bf16.mxu0 0
        %1592 = vmatpush1.bf16.msra.mxu0 0
        %1593 = vmatprep.subr.bf16.mxu0 0
        %1594 = vmatpush1.bf16.msra.mxu0 0
        %1595 = vmatprep.subr.bf16.mxu0 0
        %1596 = vmatpush1.bf16.msra.mxu0 0
        %1597 = vmatprep.subr.bf16.mxu0 0
        %1598 = vmatpush1.bf16.msra.mxu0 0
        %1599 = vmatprep.subr.bf16.mxu0 0
        %1600 = vmatpush1.bf16.msra.mxu0 0
        %1601 = vmatprep.subr.bf16.mxu0 0
        %1602 = vmatpush1.bf16.msra.mxu0 0
        %1603 = vmatprep.subr.bf16.mxu0 0
        %1604 = vmatpush1.bf16.msra.mxu0 0
        %1605 = vmatprep.subr.bf16.mxu0 0
        %1606 = vmatpush1.bf16.msra.mxu0 0
        %1607 = vmatprep.subr.bf16.mxu0 0
        %1608 = vmatpush1.bf16.msra.mxu0 0
        %1609 = vmatprep.subr.bf16.mxu0 0
        %1610 = vmatpush1.bf16.msra.mxu0 0
        %1611 = vmatprep.mubr.bf16.mxu0 0
        %1612 = vmatmul.mubr.bf16.gmra.mrb[0].mxu0 %v1057
        %v1613 = vpop.f32.mrb[0].mxu0
        %v1614 = vadd.f32 %v998, %v1613
        %v1615 = vpop.f32.mrb[0].mxu0
        %v1616 = vadd.f32 %v998, %v1615
        %v1617 = vpop.f32.mrb[0].mxu0
        %v1618 = vadd.f32 %v1003, %v1617
        %v1619 = vpop.f32.mrb[0].mxu0
        %v1620 = vadd.f32 %v1003, %v1619
        %1621 = vmatprep.mubr.bf16.mxu0 0
        %1622 = vmatmul.mubr.bf16.gmra.mrb[0].mxu0 %v1060
        %v1623 = vpop.f32.mrb[0].mxu0
        %v1624 = vadd.f32 %v1008, %v1623
        %v1625 = vpop.f32.mrb[0].mxu0
        %v1626 = vadd.f32 %v1008, %v1625
        %v1627 = vpop.f32.mrb[0].mxu0
        %v1628 = vadd.f32 %v1013, %v1627
        %v1629 = vpop.f32.mrb[0].mxu0
        %v1630 = vadd.f32 %v1013, %v1629
        %1631 = vmatprep.mubr.bf16.mxu0 0
        %1632 = vmatmul.mubr.bf16.gmra.mrb[0].mxu0 %v1063
        %v1633 = vpop.f32.mrb[0].mxu0
        %v1634 = vadd.f32 %v1018, %v1633
        %v1635 = vpop.f32.mrb[0].mxu0
        %v1636 = vadd.f32 %v1018, %v1635
        %v1637 = vpop.f32.mrb[0].mxu0
        %v1638 = vadd.f32 %v1023, %v1637
        %v1639 = vpop.f32.mrb[0].mxu0
        %v1640 = vadd.f32 %v1023, %v1639
        %1641 = vmatprep.mubr.bf16.mxu0 0
        %1642 = vmatmul.mubr.bf16.gmra.mrb[0].mxu0 %v1066
        %v1643 = vpop.f32.mrb[0].mxu0
        %v1644 = vadd.f32 %v1028, %v1643
        %v1645 = vpop.f32.mrb[0].mxu0
        %v1646 = vadd.f32 %v1028, %v1645
        %v1647 = vpop.f32.mrb[0].mxu0
        %v1648 = vadd.f32 %v1033, %v1647
        %v1649 = vpop.f32.mrb[0].mxu0
        %v1650 = vadd.f32 %v1033, %v1649
        %1651 = vdwg.mxu0
        %v1652 = vmax.f32 %v1103, 0.0
        %v1653 = vmax.f32 %v1105, 0.0
        %v1654 = vmax.f32 %v1176, 0.0
        %v1655 = vmax.f32 %v1178, 0.0
        %v1656 = vmax.f32 %v1249, 0.0
        %v1657 = vmax.f32 %v1251, 0.0
        %v1658 = vmax.f32 %v1322, 0.0
        %v1659 = vmax.f32 %v1324, 0.0
        %v1660 = vmax.f32 %v1395, 0.0
        %v1661 = vmax.f32 %v1397, 0.0
        %v1662 = vmax.f32 %v1468, 0.0
        %v1663 = vmax.f32 %v1470, 0.0
        %v1664 = vmax.f32 %v1541, 0.0
        %v1665 = vmax.f32 %v1543, 0.0
        %v1666 = vmax.f32 %v1614, 0.0
        %v1667 = vmax.f32 %v1616, 0.0
        %v1668 = vmax.f32 %v1107, 0.0
        %v1669 = vmax.f32 %v1109, 0.0
        %v1670 = vmax.f32 %v1180, 0.0
        %v1671 = vmax.f32 %v1182, 0.0
        %v1672 = vmax.f32 %v1253, 0.0
        %v1673 = vmax.f32 %v1255, 0.0
        %v1674 = vmax.f32 %v1326, 0.0
        %v1675 = vmax.f32 %v1328, 0.0
        %v1676 = vmax.f32 %v1399, 0.0
        %v1677 = vmax.f32 %v1401, 0.0
        %v1678 = vmax.f32 %v1472, 0.0
        %v1679 = vmax.f32 %v1474, 0.0
        %v1680 = vmax.f32 %v1545, 0.0
        %v1681 = vmax.f32 %v1547, 0.0
        %v1682 = vmax.f32 %v1618, 0.0
        %v1683 = vmax.f32 %v1620, 0.0
        %v1684 = vmax.f32 %v1113, 0.0
        %v1685 = vmax.f32 %v1115, 0.0
        %v1686 = vmax.f32 %v1186, 0.0
        %v1687 = vmax.f32 %v1188, 0.0
        %v1688 = vmax.f32 %v1259, 0.0
        %v1689 = vmax.f32 %v1261, 0.0
        %v1690 = vmax.f32 %v1332, 0.0
        %v1691 = vmax.f32 %v1334, 0.0
        %v1692 = vmax.f32 %v1405, 0.0
        %v1693 = vmax.f32 %v1407, 0.0
        %v1694 = vmax.f32 %v1478, 0.0
        %v1695 = vmax.f32 %v1480, 0.0
        %v1696 = vmax.f32 %v1551, 0.0
        %v1697 = vmax.f32 %v1553, 0.0
        %v1698 = vmax.f32 %v1624, 0.0
        %v1699 = vmax.f32 %v1626, 0.0
        %v1700 = vmax.f32 %v1117, 0.0
        %v1701 = vmax.f32 %v1119, 0.0
        %v1702 = vmax.f32 %v1190, 0.0
        %v1703 = vmax.f32 %v1192, 0.0
        %v1704 = vmax.f32 %v1263, 0.0
        %v1705 = vmax.f32 %v1265, 0.0
        %v1706 = vmax.f32 %v1336, 0.0
        %v1707 = vmax.f32 %v1338, 0.0
        %v1708 = vmax.f32 %v1409, 0.0
        %v1709 = vmax.f32 %v1411, 0.0
        %v1710 = vmax.f32 %v1482, 0.0
        %v1711 = vmax.f32 %v1484, 0.0
        %v1712 = vmax.f32 %v1555, 0.0
        %v1713 = vmax.f32 %v1557, 0.0
        %v1714 = vmax.f32 %v1628, 0.0
        %v1715 = vmax.f32 %v1630, 0.0
        %v1716 = vmax.f32 %v1123, 0.0
        %v1717 = vmax.f32 %v1125, 0.0
        %v1718 = vmax.f32 %v1196, 0.0
        %v1719 = vmax.f32 %v1198, 0.0
        %v1720 = vmax.f32 %v1269, 0.0
        %v1721 = vmax.f32 %v1271, 0.0
        %v1722 = vmax.f32 %v1342, 0.0
        %v1723 = vmax.f32 %v1344, 0.0
        %v1724 = vmax.f32 %v1415, 0.0
        %v1725 = vmax.f32 %v1417, 0.0
        %v1726 = vmax.f32 %v1488, 0.0
        %v1727 = vmax.f32 %v1490, 0.0
        %v1728 = vmax.f32 %v1561, 0.0
        %v1729 = vmax.f32 %v1563, 0.0
        %v1730 = vmax.f32 %v1634, 0.0
        %v1731 = vmax.f32 %v1636, 0.0
        %v1732 = vmax.f32 %v1127, 0.0
        %v1733 = vmax.f32 %v1129, 0.0
        %v1734 = vmax.f32 %v1200, 0.0
        %v1735 = vmax.f32 %v1202, 0.0
        %v1736 = vmax.f32 %v1273, 0.0
        %v1737 = vmax.f32 %v1275, 0.0
        %v1738 = vmax.f32 %v1346, 0.0
        %v1739 = vmax.f32 %v1348, 0.0
        %v1740 = vmax.f32 %v1419, 0.0
        %v1741 = vmax.f32 %v1421, 0.0
        %v1742 = vmax.f32 %v1492, 0.0
        %v1743 = vmax.f32 %v1494, 0.0
        %v1744 = vmax.f32 %v1565, 0.0
        %v1745 = vmax.f32 %v1567, 0.0
        %v1746 = vmax.f32 %v1638, 0.0
        %v1747 = vmax.f32 %v1640, 0.0
        %v1748 = vmax.f32 %v1133, 0.0
        %v1749 = vmax.f32 %v1135, 0.0
        %v1750 = vmax.f32 %v1206, 0.0
        %v1751 = vmax.f32 %v1208, 0.0
        %v1752 = vmax.f32 %v1279, 0.0
        %v1753 = vmax.f32 %v1281, 0.0
        %v1754 = vmax.f32 %v1352, 0.0
        %v1755 = vmax.f32 %v1354, 0.0
        %v1756 = vmax.f32 %v1425, 0.0
        %v1757 = vmax.f32 %v1427, 0.0
        %v1758 = vmax.f32 %v1498, 0.0
        %v1759 = vmax.f32 %v1500, 0.0
        %v1760 = vmax.f32 %v1571, 0.0
        %v1761 = vmax.f32 %v1573, 0.0
        %v1762 = vmax.f32 %v1644, 0.0
        %v1763 = vmax.f32 %v1646, 0.0
        %v1764 = vmax.f32 %v1137, 0.0
        %v1765 = vmax.f32 %v1139, 0.0
        %v1766 = vmax.f32 %v1210, 0.0
        %v1767 = vmax.f32 %v1212, 0.0
        %v1768 = vmax.f32 %v1283, 0.0
        %v1769 = vmax.f32 %v1285, 0.0
        %v1770 = vmax.f32 %v1356, 0.0
        %v1771 = vmax.f32 %v1358, 0.0
        %v1772 = vmax.f32 %v1429, 0.0
        %v1773 = vmax.f32 %v1431, 0.0
        %v1774 = vmax.f32 %v1502, 0.0
        %v1775 = vmax.f32 %v1504, 0.0
        %v1776 = vmax.f32 %v1575, 0.0
        %v1777 = vmax.f32 %v1577, 0.0
        %v1778 = vmax.f32 %v1648, 0.0
        %v1779 = vmax.f32 %v1650, 0.0
        %v1780 = vld [vmem:[%s5] sm:$0xf]
        %v1781 = vld [vmem:[%s5 + $0x4] sm:$0xf]
        %v1782 = vld [vmem:[%s5 + $0x8] sm:$0x1]
        %v1783 = vpack.c.bf16 %v1668, %v1652
        %v1784 = vpack.c.bf16 %v1669, %v1653
        %v1785 = vpack.c.bf16 %v1670, %v1654
        %v1786 = vpack.c.bf16 %v1671, %v1655
        %v1787 = vpack.c.bf16 %v1672, %v1656
        %v1788 = vpack.c.bf16 %v1673, %v1657
        %v1789 = vpack.c.bf16 %v1674, %v1658
        %v1790 = vpack.c.bf16 %v1675, %v1659
        %v1791 = vpack.c.bf16 %v1676, %v1660
        %v1792 = vpack.c.bf16 %v1677, %v1661
        %v1793 = vpack.c.bf16 %v1678, %v1662
        %v1794 = vpack.c.bf16 %v1679, %v1663
        %v1795 = vpack.c.bf16 %v1680, %v1664
        %v1796 = vpack.c.bf16 %v1681, %v1665
        %v1797 = vpack.c.bf16 %v1682, %v1666
        %v1798 = vpack.c.bf16 %v1683, %v1667
        %v1799 = vpack.c.bf16 %v1700, %v1684
        %v1800 = vpack.c.bf16 %v1701, %v1685
        %v1801 = vpack.c.bf16 %v1702, %v1686
        %v1802 = vpack.c.bf16 %v1703, %v1687
        %v1803 = vpack.c.bf16 %v1704, %v1688
        %v1804 = vpack.c.bf16 %v1705, %v1689
        %v1805 = vpack.c.bf16 %v1706, %v1690
        %v1806 = vpack.c.bf16 %v1707, %v1691
        %v1807 = vpack.c.bf16 %v1708, %v1692
        %v1808 = vpack.c.bf16 %v1709, %v1693
        %v1809 = vpack.c.bf16 %v1710, %v1694
        %v1810 = vpack.c.bf16 %v1711, %v1695
        %v1811 = vpack.c.bf16 %v1712, %v1696
        %v1812 = vpack.c.bf16 %v1713, %v1697
        %v1813 = vpack.c.bf16 %v1714, %v1698
        %v1814 = vpack.c.bf16 %v1715, %v1699
        %v1815 = vpack.c.bf16 %v1732, %v1716
        %v1816 = vpack.c.bf16 %v1733, %v1717
        %v1817 = vpack.c.bf16 %v1734, %v1718
        %v1818 = vpack.c.bf16 %v1735, %v1719
        %v1819 = vpack.c.bf16 %v1736, %v1720
        %v1820 = vpack.c.bf16 %v1737, %v1721
        %v1821 = vpack.c.bf16 %v1738, %v1722
        %v1822 = vpack.c.bf16 %v1739, %v1723
        %v1823 = vpack.c.bf16 %v1740, %v1724
        %v1824 = vpack.c.bf16 %v1741, %v1725
        %v1825 = vpack.c.bf16 %v1742, %v1726
        %v1826 = vpack.c.bf16 %v1743, %v1727
        %v1827 = vpack.c.bf16 %v1744, %v1728
        %v1828 = vpack.c.bf16 %v1745, %v1729
        %v1829 = vpack.c.bf16 %v1746, %v1730
        %v1830 = vpack.c.bf16 %v1747, %v1731
        %v1831 = vpack.c.bf16 %v1764, %v1748
        %v1832 = vpack.c.bf16 %v1765, %v1749
        %v1833 = vpack.c.bf16 %v1766, %v1750
        %v1834 = vpack.c.bf16 %v1767, %v1751
        %v1835 = vpack.c.bf16 %v1768, %v1752
        %v1836 = vpack.c.bf16 %v1769, %v1753
        %v1837 = vpack.c.bf16 %v1770, %v1754
        %v1838 = vpack.c.bf16 %v1771, %v1755
        %v1839 = vpack.c.bf16 %v1772, %v1756
        %v1840 = vpack.c.bf16 %v1773, %v1757
        %v1841 = vpack.c.bf16 %v1774, %v1758
        %v1842 = vpack.c.bf16 %v1775, %v1759
        %v1843 = vpack.c.bf16 %v1776, %v1760
        %v1844 = vpack.c.bf16 %v1777, %v1761
        %v1845 = vpack.c.bf16 %v1778, %v1762
        %v1846 = vpack.c.bf16 %v1779, %v1763
        %v1847 = vld [vmem:[%s6] sm:$0xff]
        %v1848 = vld [vmem:[%s6 + $0x8] sm:$0xff]
        %v1849 = vld [vmem:[%s6 + $0x10] sm:$0x1]
        %1851 = vset.pattern.permute.xlu0 0
        %1852 = vperm.xlu0 %1851, %v1847
        %v1853 = vpop.permute.xlu0 %1852
        %1856 = vset.pattern.permute.xlu0 0
        %1857 = vperm.xlu0 %1856, %v1848
        %v1858 = vpop.permute.xlu0 %1857
        %1861 = vset.pattern.permute.xlu0 0
        %1862 = vperm.xlu0 %1861, %v1849
        %v1863 = vpop.permute.xlu0 %1862
        %v1868 = vunpack.c.l.b16 %v1780
        %v1869 = vunpack.c.l.b16 %v1781
        %v1870 = vunpack.c.l.b16 %v1782
        %v1871 = vpack.c.b16 %v1869, %v1868
        %v1872 = vpack.c.b16 %v1870, %v1870
        %v1874 = vsel %vm1055, %v1871, 0
        %v1877 = vsel %vm1055, %v1872, 0
        %1879 = vmatprep.subr.bf16.mxu0 %v1784
        %1880 = vmatpush1.bf16.msra.mxu0 %v1783
        %1881 = vmatprep.subr.bf16.mxu0 %v1800
        %1882 = vmatpush1.bf16.msra.mxu0 %v1799
        %1883 = vmatprep.subr.bf16.mxu0 %v1816
        %1884 = vmatpush1.bf16.msra.mxu0 %v1815
        %1885 = vmatprep.subr.bf16.mxu0 %v1832
        %1886 = vmatpush1.bf16.msra.mxu0 %v1831
        %1887 = vmatprep.subr.bf16.mxu0 0
        %1888 = vmatpush1.bf16.msra.mxu0 0
        %1889 = vmatprep.subr.bf16.mxu0 0
        %1890 = vmatpush1.bf16.msra.mxu0 0
        %1891 = vmatprep.subr.bf16.mxu0 0
        %1892 = vmatpush1.bf16.msra.mxu0 0
        %1893 = vmatprep.subr.bf16.mxu0 0
        %1894 = vmatpush1.bf16.msra.mxu0 0
        %1895 = vmatprep.subr.bf16.mxu0 0
        %1896 = vmatpush1.bf16.msra.mxu0 0
        %1897 = vmatprep.subr.bf16.mxu0 0
        %1898 = vmatpush1.bf16.msra.mxu0 0
        %1899 = vmatprep.subr.bf16.mxu0 0
        %1900 = vmatpush1.bf16.msra.mxu0 0
        %1901 = vmatprep.subr.bf16.mxu0 0
        %1902 = vmatpush1.bf16.msra.mxu0 0
        %1903 = vmatprep.subr.bf16.mxu0 0
        %1904 = vmatpush1.bf16.msra.mxu0 0
        %1905 = vmatprep.subr.bf16.mxu0 0
        %1906 = vmatpush1.bf16.msra.mxu0 0
        %1907 = vmatprep.subr.bf16.mxu0 0
        %1908 = vmatpush1.bf16.msra.mxu0 0
        %1909 = vmatprep.subr.bf16.mxu0 0
        %1910 = vmatpush1.bf16.msra.mxu0 0
        %1911 = vmatprep.mubr.bf16.mxu0 0
        %1912 = vmatmul.mubr.bf16.gmra.mrb[0].mxu0 %v1874
        %v1913 = vpop.f32.mrb[0].mxu0
        %v1914 = vadd.f32 %v1853, %v1913
        %v1915 = vpop.f32.mrb[0].mxu0
        %v1916 = vadd.f32 %v1853, %v1915
        %v1917 = vpop.f32.mrb[0].mxu0
        %v1918 = vadd.f32 %v1858, %v1917
        %v1919 = vpop.f32.mrb[0].mxu0
        %v1920 = vadd.f32 %v1858, %v1919
        %1921 = vmatprep.mubr.bf16.mxu0 0
        %1922 = vmatmul.mubr.bf16.gmra.mrb[0].mxu0 %v1877
        %v1923 = vpop.f32.mrb[0].mxu0
        %v1924 = vadd.f32 %v1863, %v1923
        %v1925 = vpop.f32.mrb[0].mxu0
        %v1926 = vadd.f32 %v1863, %v1925
        %v1927 = vpop.f32.mrb[0].mxu0
        %v1928 = vpop.f32.mrb[0].mxu0
        %1929 = vdwg.mxu0
        %1930 = vmatprep.subr.bf16.mxu0 %v1786
        %1931 = vmatpush1.bf16.msra.mxu0 %v1785
        %1932 = vmatprep.subr.bf16.mxu0 %v1802
        %1933 = vmatpush1.bf16.msra.mxu0 %v1801
        %1934 = vmatprep.subr.bf16.mxu0 %v1818
        %1935 = vmatpush1.bf16.msra.mxu0 %v1817
        %1936 = vmatprep.subr.bf16.mxu0 %v1834
        %1937 = vmatpush1.bf16.msra.mxu0 %v1833
        %1938 = vmatprep.subr.bf16.mxu0 0
        %1939 = vmatpush1.bf16.msra.mxu0 0
        %1940 = vmatprep.subr.bf16.mxu0 0
        %1941 = vmatpush1.bf16.msra.mxu0 0
        %1942 = vmatprep.subr.bf16.mxu0 0
        %1943 = vmatpush1.bf16.msra.mxu0 0
        %1944 = vmatprep.subr.bf16.mxu0 0
        %1945 = vmatpush1.bf16.msra.mxu0 0
        %1946 = vmatprep.subr.bf16.mxu0 0
        %1947 = vmatpush1.bf16.msra.mxu0 0
        %1948 = vmatprep.subr.bf16.mxu0 0
        %1949 = vmatpush1.bf16.msra.mxu0 0
        %1950 = vmatprep.subr.bf16.mxu0 0
        %1951 = vmatpush1.bf16.msra.mxu0 0
        %1952 = vmatprep.subr.bf16.mxu0 0
        %1953 = vmatpush1.bf16.msra.mxu0 0
        %1954 = vmatprep.subr.bf16.mxu0 0
        %1955 = vmatpush1.bf16.msra.mxu0 0
        %1956 = vmatprep.subr.bf16.mxu0 0
        %1957 = vmatpush1.bf16.msra.mxu0 0
        %1958 = vmatprep.subr.bf16.mxu0 0
        %1959 = vmatpush1.bf16.msra.mxu0 0
        %1960 = vmatprep.subr.bf16.mxu0 0
        %1961 = vmatpush1.bf16.msra.mxu0 0
        %1962 = vmatprep.mubr.bf16.mxu0 0
        %1963 = vmatmul.mubr.bf16.gmra.mrb[0].mxu0 %v1874
        %v1964 = vpop.f32.mrb[0].mxu0
        %v1965 = vadd.f32 %v1853, %v1964
        %v1966 = vpop.f32.mrb[0].mxu0
        %v1967 = vadd.f32 %v1853, %v1966
        %v1968 = vpop.f32.mrb[0].mxu0
        %v1969 = vadd.f32 %v1858, %v1968
        %v1970 = vpop.f32.mrb[0].mxu0
        %v1971 = vadd.f32 %v1858, %v1970
        %1972 = vmatprep.mubr.bf16.mxu0 0
        %1973 = vmatmul.mubr.bf16.gmra.mrb[0].mxu0 %v1877
        %v1974 = vpop.f32.mrb[0].mxu0
        %v1975 = vadd.f32 %v1863, %v1974
        %v1976 = vpop.f32.mrb[0].mxu0
        %v1977 = vadd.f32 %v1863, %v1976
        %v1978 = vpop.f32.mrb[0].mxu0
        %v1979 = vpop.f32.mrb[0].mxu0
        %1980 = vdwg.mxu0
        %1981 = vmatprep.subr.bf16.mxu0 %v1788
        %1982 = vmatpush1.bf16.msra.mxu0 %v1787
        %1983 = vmatprep.subr.bf16.mxu0 %v1804
        %1984 = vmatpush1.bf16.msra.mxu0 %v1803
        %1985 = vmatprep.subr.bf16.mxu0 %v1820
        %1986 = vmatpush1.bf16.msra.mxu0 %v1819
        %1987 = vmatprep.subr.bf16.mxu0 %v1836
        %1988 = vmatpush1.bf16.msra.mxu0 %v1835
        %1989 = vmatprep.subr.bf16.mxu0 0
        %1990 = vmatpush1.bf16.msra.mxu0 0
        %1991 = vmatprep.subr.bf16.mxu0 0
        %1992 = vmatpush1.bf16.msra.mxu0 0
        %1993 = vmatprep.subr.bf16.mxu0 0
        %1994 = vmatpush1.bf16.msra.mxu0 0
        %1995 = vmatprep.subr.bf16.mxu0 0
        %1996 = vmatpush1.bf16.msra.mxu0 0
        %1997 = vmatprep.subr.bf16.mxu0 0
        %1998 = vmatpush1.bf16.msra.mxu0 0
        %1999 = vmatprep.subr.bf16.mxu0 0
        %2000 = vmatpush1.bf16.msra.mxu0 0
        %2001 = vmatprep.subr.bf16.mxu0 0
        %2002 = vmatpush1.bf16.msra.mxu0 0
        %2003 = vmatprep.subr.bf16.mxu0 0
        %2004 = vmatpush1.bf16.msra.mxu0 0
        %2005 = vmatprep.subr.bf16.mxu0 0
        %2006 = vmatpush1.bf16.msra.mxu0 0
        %2007 = vmatprep.subr.bf16.mxu0 0
        %2008 = vmatpush1.bf16.msra.mxu0 0
        %2009 = vmatprep.subr.bf16.mxu0 0
        %2010 = vmatpush1.bf16.msra.mxu0 0
        %2011 = vmatprep.subr.bf16.mxu0 0
        %2012 = vmatpush1.bf16.msra.mxu0 0
        %2013 = vmatprep.mubr.bf16.mxu0 0
        %2014 = vmatmul.mubr.bf16.gmra.mrb[0].mxu0 %v1874
        %v2015 = vpop.f32.mrb[0].mxu0
        %v2016 = vadd.f32 %v1853, %v2015
        %v2017 = vpop.f32.mrb[0].mxu0
        %v2018 = vadd.f32 %v1853, %v2017
        %v2019 = vpop.f32.mrb[0].mxu0
        %v2020 = vadd.f32 %v1858, %v2019
        %v2021 = vpop.f32.mrb[0].mxu0
        %v2022 = vadd.f32 %v1858, %v2021
        %2023 = vmatprep.mubr.bf16.mxu0 0
        %2024 = vmatmul.mubr.bf16.gmra.mrb[0].mxu0 %v1877
        %v2025 = vpop.f32.mrb[0].mxu0
        %v2026 = vadd.f32 %v1863, %v2025
        %v2027 = vpop.f32.mrb[0].mxu0
        %v2028 = vadd.f32 %v1863, %v2027
        %v2029 = vpop.f32.mrb[0].mxu0
        %v2030 = vpop.f32.mrb[0].mxu0
        %2031 = vdwg.mxu0
        %2032 = vmatprep.subr.bf16.mxu0 %v1790
        %2033 = vmatpush1.bf16.msra.mxu0 %v1789
        %2034 = vmatprep.subr.bf16.mxu0 %v1806
        %2035 = vmatpush1.bf16.msra.mxu0 %v1805
        %2036 = vmatprep.subr.bf16.mxu0 %v1822
        %2037 = vmatpush1.bf16.msra.mxu0 %v1821
        %2038 = vmatprep.subr.bf16.mxu0 %v1838
        %2039 = vmatpush1.bf16.msra.mxu0 %v1837
        %2040 = vmatprep.subr.bf16.mxu0 0
        %2041 = vmatpush1.bf16.msra.mxu0 0
        %2042 = vmatprep.subr.bf16.mxu0 0
        %2043 = vmatpush1.bf16.msra.mxu0 0
        %2044 = vmatprep.subr.bf16.mxu0 0
        %2045 = vmatpush1.bf16.msra.mxu0 0
        %2046 = vmatprep.subr.bf16.mxu0 0
        %2047 = vmatpush1.bf16.msra.mxu0 0
        %2048 = vmatprep.subr.bf16.mxu0 0
        %2049 = vmatpush1.bf16.msra.mxu0 0
        %2050 = vmatprep.subr.bf16.mxu0 0
        %2051 = vmatpush1.bf16.msra.mxu0 0
        %2052 = vmatprep.subr.bf16.mxu0 0
        %2053 = vmatpush1.bf16.msra.mxu0 0
        %2054 = vmatprep.subr.bf16.mxu0 0
        %2055 = vmatpush1.bf16.msra.mxu0 0
        %2056 = vmatprep.subr.bf16.mxu0 0
        %2057 = vmatpush1.bf16.msra.mxu0 0
        %2058 = vmatprep.subr.bf16.mxu0 0
        %2059 = vmatpush1.bf16.msra.mxu0 0
        %2060 = vmatprep.subr.bf16.mxu0 0
        %2061 = vmatpush1.bf16.msra.mxu0 0
        %2062 = vmatprep.subr.bf16.mxu0 0
        %2063 = vmatpush1.bf16.msra.mxu0 0
        %2064 = vmatprep.mubr.bf16.mxu0 0
        %2065 = vmatmul.mubr.bf16.gmra.mrb[0].mxu0 %v1874
        %v2066 = vpop.f32.mrb[0].mxu0
        %v2067 = vadd.f32 %v1853, %v2066
        %v2068 = vpop.f32.mrb[0].mxu0
        %v2069 = vadd.f32 %v1853, %v2068
        %v2070 = vpop.f32.mrb[0].mxu0
        %v2071 = vadd.f32 %v1858, %v2070
        %v2072 = vpop.f32.mrb[0].mxu0
        %v2073 = vadd.f32 %v1858, %v2072
        %2074 = vmatprep.mubr.bf16.mxu0 0
        %2075 = vmatmul.mubr.bf16.gmra.mrb[0].mxu0 %v1877
        %v2076 = vpop.f32.mrb[0].mxu0
        %v2077 = vadd.f32 %v1863, %v2076
        %v2078 = vpop.f32.mrb[0].mxu0
        %v2079 = vadd.f32 %v1863, %v2078
        %v2080 = vpop.f32.mrb[0].mxu0
        %v2081 = vpop.f32.mrb[0].mxu0
        %2082 = vdwg.mxu0
        %2083 = vmatprep.subr.bf16.mxu0 %v1792
        %2084 = vmatpush1.bf16.msra.mxu0 %v1791
        %2085 = vmatprep.subr.bf16.mxu0 %v1808
        %2086 = vmatpush1.bf16.msra.mxu0 %v1807
        %2087 = vmatprep.subr.bf16.mxu0 %v1824
        %2088 = vmatpush1.bf16.msra.mxu0 %v1823
        %2089 = vmatprep.subr.bf16.mxu0 %v1840
        %2090 = vmatpush1.bf16.msra.mxu0 %v1839
        %2091 = vmatprep.subr.bf16.mxu0 0
        %2092 = vmatpush1.bf16.msra.mxu0 0
        %2093 = vmatprep.subr.bf16.mxu0 0
        %2094 = vmatpush1.bf16.msra.mxu0 0
        %2095 = vmatprep.subr.bf16.mxu0 0
        %2096 = vmatpush1.bf16.msra.mxu0 0
        %2097 = vmatprep.subr.bf16.mxu0 0
        %2098 = vmatpush1.bf16.msra.mxu0 0
        %2099 = vmatprep.subr.bf16.mxu0 0
        %2100 = vmatpush1.bf16.msra.mxu0 0
        %2101 = vmatprep.subr.bf16.mxu0 0
        %2102 = vmatpush1.bf16.msra.mxu0 0
        %2103 = vmatprep.subr.bf16.mxu0 0
        %2104 = vmatpush1.bf16.msra.mxu0 0
        %2105 = vmatprep.subr.bf16.mxu0 0
        %2106 = vmatpush1.bf16.msra.mxu0 0
        %2107 = vmatprep.subr.bf16.mxu0 0
        %2108 = vmatpush1.bf16.msra.mxu0 0
        %2109 = vmatprep.subr.bf16.mxu0 0
        %2110 = vmatpush1.bf16.msra.mxu0 0
        %2111 = vmatprep.subr.bf16.mxu0 0
        %2112 = vmatpush1.bf16.msra.mxu0 0
        %2113 = vmatprep.subr.bf16.mxu0 0
        %2114 = vmatpush1.bf16.msra.mxu0 0
        %2115 = vmatprep.mubr.bf16.mxu0 0
        %2116 = vmatmul.mubr.bf16.gmra.mrb[0].mxu0 %v1874
        %v2117 = vpop.f32.mrb[0].mxu0
        %v2118 = vadd.f32 %v1853, %v2117
        %v2119 = vpop.f32.mrb[0].mxu0
        %v2120 = vadd.f32 %v1853, %v2119
        %v2121 = vpop.f32.mrb[0].mxu0
        %v2122 = vadd.f32 %v1858, %v2121
        %v2123 = vpop.f32.mrb[0].mxu0
        %v2124 = vadd.f32 %v1858, %v2123
        %2125 = vmatprep.mubr.bf16.mxu0 0
        %2126 = vmatmul.mubr.bf16.gmra.mrb[0].mxu0 %v1877
        %v2127 = vpop.f32.mrb[0].mxu0
        %v2128 = vadd.f32 %v1863, %v2127
        %v2129 = vpop.f32.mrb[0].mxu0
        %v2130 = vadd.f32 %v1863, %v2129
        %v2131 = vpop.f32.mrb[0].mxu0
        %v2132 = vpop.f32.mrb[0].mxu0
        %2133 = vdwg.mxu0
        %2134 = vmatprep.subr.bf16.mxu0 %v1794
        %2135 = vmatpush1.bf16.msra.mxu0 %v1793
        %2136 = vmatprep.subr.bf16.mxu0 %v1810
        %2137 = vmatpush1.bf16.msra.mxu0 %v1809
        %2138 = vmatprep.subr.bf16.mxu0 %v1826
        %2139 = vmatpush1.bf16.msra.mxu0 %v1825
        %2140 = vmatprep.subr.bf16.mxu0 %v1842
        %2141 = vmatpush1.bf16.msra.mxu0 %v1841
        %2142 = vmatprep.subr.bf16.mxu0 0
        %2143 = vmatpush1.bf16.msra.mxu0 0
        %2144 = vmatprep.subr.bf16.mxu0 0
        %2145 = vmatpush1.bf16.msra.mxu0 0
        %2146 = vmatprep.subr.bf16.mxu0 0
        %2147 = vmatpush1.bf16.msra.mxu0 0
        %2148 = vmatprep.subr.bf16.mxu0 0
        %2149 = vmatpush1.bf16.msra.mxu0 0
        %2150 = vmatprep.subr.bf16.mxu0 0
        %2151 = vmatpush1.bf16.msra.mxu0 0
        %2152 = vmatprep.subr.bf16.mxu0 0
        %2153 = vmatpush1.bf16.msra.mxu0 0
        %2154 = vmatprep.subr.bf16.mxu0 0
        %2155 = vmatpush1.bf16.msra.mxu0 0
        %2156 = vmatprep.subr.bf16.mxu0 0
        %2157 = vmatpush1.bf16.msra.mxu0 0
        %2158 = vmatprep.subr.bf16.mxu0 0
        %2159 = vmatpush1.bf16.msra.mxu0 0
        %2160 = vmatprep.subr.bf16.mxu0 0
        %2161 = vmatpush1.bf16.msra.mxu0 0
        %2162 = vmatprep.subr.bf16.mxu0 0
        %2163 = vmatpush1.bf16.msra.mxu0 0
        %2164 = vmatprep.subr.bf16.mxu0 0
        %2165 = vmatpush1.bf16.msra.mxu0 0
        %2166 = vmatprep.mubr.bf16.mxu0 0
        %2167 = vmatmul.mubr.bf16.gmra.mrb[0].mxu0 %v1874
        %v2168 = vpop.f32.mrb[0].mxu0
        %v2169 = vadd.f32 %v1853, %v2168
        %v2170 = vpop.f32.mrb[0].mxu0
        %v2171 = vadd.f32 %v1853, %v2170
        %v2172 = vpop.f32.mrb[0].mxu0
        %v2173 = vadd.f32 %v1858, %v2172
        %v2174 = vpop.f32.mrb[0].mxu0
        %v2175 = vadd.f32 %v1858, %v2174
        %2176 = vmatprep.mubr.bf16.mxu0 0
        %2177 = vmatmul.mubr.bf16.gmra.mrb[0].mxu0 %v1877
        %v2178 = vpop.f32.mrb[0].mxu0
        %v2179 = vadd.f32 %v1863, %v2178
        %v2180 = vpop.f32.mrb[0].mxu0
        %v2181 = vadd.f32 %v1863, %v2180
        %v2182 = vpop.f32.mrb[0].mxu0
        %v2183 = vpop.f32.mrb[0].mxu0
        %2184 = vdwg.mxu0
        %2185 = vmatprep.subr.bf16.mxu0 %v1796
        %2186 = vmatpush1.bf16.msra.mxu0 %v1795
        %2187 = vmatprep.subr.bf16.mxu0 %v1812
        %2188 = vmatpush1.bf16.msra.mxu0 %v1811
        %2189 = vmatprep.subr.bf16.mxu0 %v1828
        %2190 = vmatpush1.bf16.msra.mxu0 %v1827
        %2191 = vmatprep.subr.bf16.mxu0 %v1844
        %2192 = vmatpush1.bf16.msra.mxu0 %v1843
        %2193 = vmatprep.subr.bf16.mxu0 0
        %2194 = vmatpush1.bf16.msra.mxu0 0
        %2195 = vmatprep.subr.bf16.mxu0 0
        %2196 = vmatpush1.bf16.msra.mxu0 0
        %2197 = vmatprep.subr.bf16.mxu0 0
        %2198 = vmatpush1.bf16.msra.mxu0 0
        %2199 = vmatprep.subr.bf16.mxu0 0
        %2200 = vmatpush1.bf16.msra.mxu0 0
        %2201 = vmatprep.subr.bf16.mxu0 0
        %2202 = vmatpush1.bf16.msra.mxu0 0
        %2203 = vmatprep.subr.bf16.mxu0 0
        %2204 = vmatpush1.bf16.msra.mxu0 0
        %2205 = vmatprep.subr.bf16.mxu0 0
        %2206 = vmatpush1.bf16.msra.mxu0 0
        %2207 = vmatprep.subr.bf16.mxu0 0
        %2208 = vmatpush1.bf16.msra.mxu0 0
        %2209 = vmatprep.subr.bf16.mxu0 0
        %2210 = vmatpush1.bf16.msra.mxu0 0
        %2211 = vmatprep.subr.bf16.mxu0 0
        %2212 = vmatpush1.bf16.msra.mxu0 0
        %2213 = vmatprep.subr.bf16.mxu0 0
        %2214 = vmatpush1.bf16.msra.mxu0 0
        %2215 = vmatprep.subr.bf16.mxu0 0
        %2216 = vmatpush1.bf16.msra.mxu0 0
        %2217 = vmatprep.mubr.bf16.mxu0 0
        %2218 = vmatmul.mubr.bf16.gmra.mrb[0].mxu0 %v1874
        %v2219 = vpop.f32.mrb[0].mxu0
        %v2220 = vadd.f32 %v1853, %v2219
        %v2221 = vpop.f32.mrb[0].mxu0
        %v2222 = vadd.f32 %v1853, %v2221
        %v2223 = vpop.f32.mrb[0].mxu0
        %v2224 = vadd.f32 %v1858, %v2223
        %v2225 = vpop.f32.mrb[0].mxu0
        %v2226 = vadd.f32 %v1858, %v2225
        %2227 = vmatprep.mubr.bf16.mxu0 0
        %2228 = vmatmul.mubr.bf16.gmra.mrb[0].mxu0 %v1877
        %v2229 = vpop.f32.mrb[0].mxu0
        %v2230 = vadd.f32 %v1863, %v2229
        %v2231 = vpop.f32.mrb[0].mxu0
        %v2232 = vadd.f32 %v1863, %v2231
        %v2233 = vpop.f32.mrb[0].mxu0
        %v2234 = vpop.f32.mrb[0].mxu0
        %2235 = vdwg.mxu0
        %2236 = vmatprep.subr.bf16.mxu0 %v1798
        %2237 = vmatpush1.bf16.msra.mxu0 %v1797
        %2238 = vmatprep.subr.bf16.mxu0 %v1814
        %2239 = vmatpush1.bf16.msra.mxu0 %v1813
        %2240 = vmatprep.subr.bf16.mxu0 %v1830
        %2241 = vmatpush1.bf16.msra.mxu0 %v1829
        %2242 = vmatprep.subr.bf16.mxu0 %v1846
        %2243 = vmatpush1.bf16.msra.mxu0 %v1845
        %2244 = vmatprep.subr.bf16.mxu0 0
        %2245 = vmatpush1.bf16.msra.mxu0 0
        %2246 = vmatprep.subr.bf16.mxu0 0
        %2247 = vmatpush1.bf16.msra.mxu0 0
        %2248 = vmatprep.subr.bf16.mxu0 0
        %2249 = vmatpush1.bf16.msra.mxu0 0
        %2250 = vmatprep.subr.bf16.mxu0 0
        %2251 = vmatpush1.bf16.msra.mxu0 0
        %2252 = vmatprep.subr.bf16.mxu0 0
        %2253 = vmatpush1.bf16.msra.mxu0 0
        %2254 = vmatprep.subr.bf16.mxu0 0
        %2255 = vmatpush1.bf16.msra.mxu0 0
        %2256 = vmatprep.subr.bf16.mxu0 0
        %2257 = vmatpush1.bf16.msra.mxu0 0
        %2258 = vmatprep.subr.bf16.mxu0 0
        %2259 = vmatpush1.bf16.msra.mxu0 0
        %2260 = vmatprep.subr.bf16.mxu0 0
        %2261 = vmatpush1.bf16.msra.mxu0 0
        %2262 = vmatprep.subr.bf16.mxu0 0
        %2263 = vmatpush1.bf16.msra.mxu0 0
        %2264 = vmatprep.subr.bf16.mxu0 0
        %2265 = vmatpush1.bf16.msra.mxu0 0
        %2266 = vmatprep.subr.bf16.mxu0 0
        %2267 = vmatpush1.bf16.msra.mxu0 0
        %2268 = vmatprep.mubr.bf16.mxu0 0
        %2269 = vmatmul.mubr.bf16.gmra.mrb[0].mxu0 %v1874
        %v2270 = vpop.f32.mrb[0].mxu0
        %v2271 = vadd.f32 %v1853, %v2270
        %v2272 = vpop.f32.mrb[0].mxu0
        %v2273 = vadd.f32 %v1853, %v2272
        %v2274 = vpop.f32.mrb[0].mxu0
        %v2275 = vadd.f32 %v1858, %v2274
        %v2276 = vpop.f32.mrb[0].mxu0
        %v2277 = vadd.f32 %v1858, %v2276
        %2278 = vmatprep.mubr.bf16.mxu0 0
        %2279 = vmatmul.mubr.bf16.gmra.mrb[0].mxu0 %v1877
        %v2280 = vpop.f32.mrb[0].mxu0
        %v2281 = vadd.f32 %v1863, %v2280
        %v2282 = vpop.f32.mrb[0].mxu0
        %v2283 = vadd.f32 %v1863, %v2282
        %v2284 = vpop.f32.mrb[0].mxu0
        %v2285 = vpop.f32.mrb[0].mxu0
        %2286 = vdwg.mxu0
        %v2287 = vmax.f32 %v1914, 0.0
        %v2288 = vmax.f32 %v1916, 0.0
        %v2289 = vmax.f32 %v1965, 0.0
        %v2290 = vmax.f32 %v1967, 0.0
        %v2291 = vmax.f32 %v2016, 0.0
        %v2292 = vmax.f32 %v2018, 0.0
        %v2293 = vmax.f32 %v2067, 0.0
        %v2294 = vmax.f32 %v2069, 0.0
        %v2295 = vmax.f32 %v2118, 0.0
        %v2296 = vmax.f32 %v2120, 0.0
        %v2297 = vmax.f32 %v2169, 0.0
        %v2298 = vmax.f32 %v2171, 0.0
        %v2299 = vmax.f32 %v2220, 0.0
        %v2300 = vmax.f32 %v2222, 0.0
        %v2301 = vmax.f32 %v2271, 0.0
        %v2302 = vmax.f32 %v2273, 0.0
        %v2303 = vsub.f32 0.0, %v2287
        %v2304 = vsub.f32 0.0, %v2288
        %v2305 = vsub.f32 0.0, %v2289
        %v2306 = vsub.f32 0.0, %v2290
        %v2307 = vsub.f32 0.0, %v2291
        %v2308 = vsub.f32 0.0, %v2292
        %v2309 = vsub.f32 0.0, %v2293
        %v2310 = vsub.f32 0.0, %v2294
        %v2311 = vsub.f32 0.0, %v2295
        %v2312 = vsub.f32 0.0, %v2296
        %v2313 = vsub.f32 0.0, %v2297
        %v2314 = vsub.f32 0.0, %v2298
        %v2315 = vsub.f32 0.0, %v2299
        %v2316 = vsub.f32 0.0, %v2300
        %v2317 = vsub.f32 0.0, %v2301
        %v2318 = vsub.f32 0.0, %v2302
        %v2319 = vmul.f32 %v2303, 0.1
        %v2320 = vmul.f32 %v2304, 0.1
        %v2321 = vmul.f32 %v2305, 0.1
        %v2322 = vmul.f32 %v2306, 0.1
        %v2323 = vmul.f32 %v2307, 0.1
        %v2324 = vmul.f32 %v2308, 0.1
        %v2325 = vmul.f32 %v2309, 0.1
        %v2326 = vmul.f32 %v2310, 0.1
        %v2327 = vmul.f32 %v2311, 0.1
        %v2328 = vmul.f32 %v2312, 0.1
        %v2329 = vmul.f32 %v2313, 0.1
        %v2330 = vmul.f32 %v2314, 0.1
        %v2331 = vmul.f32 %v2315, 0.1
        %v2332 = vmul.f32 %v2316, 0.1
        %v2333 = vmul.f32 %v2317, 0.1
        %v2334 = vmul.f32 %v2318, 0.1
        %v2335 = vmul.f32 %v2319, 1.442695
        %v2336 = vpow.pop %v2335
        %v2337 = vmul.f32 %v2320, 1.442695
        %v2338 = vpow.pop %v2337
        %v2339 = vmul.f32 %v2321, 1.442695
        %v2340 = vpow.pop %v2339
        %v2341 = vmul.f32 %v2322, 1.442695
        %v2342 = vpow.pop %v2341
        %v2343 = vmul.f32 %v2323, 1.442695
        %v2344 = vpow.pop %v2343
        %v2345 = vmul.f32 %v2324, 1.442695
        %v2346 = vpow.pop %v2345
        %v2347 = vmul.f32 %v2325, 1.442695
        %v2348 = vpow.pop %v2347
        %v2349 = vmul.f32 %v2326, 1.442695
        %v2350 = vpow.pop %v2349
        %v2351 = vmul.f32 %v2327, 1.442695
        %v2352 = vpow.pop %v2351
        %v2353 = vmul.f32 %v2328, 1.442695
        %v2354 = vpow.pop %v2353
        %v2355 = vmul.f32 %v2329, 1.442695
        %v2356 = vpow.pop %v2355
        %v2357 = vmul.f32 %v2330, 1.442695
        %v2358 = vpow.pop %v2357
        %v2359 = vmul.f32 %v2331, 1.442695
        %v2360 = vpow.pop %v2359
        %v2361 = vmul.f32 %v2332, 1.442695
        %v2362 = vpow.pop %v2361
        %v2363 = vmul.f32 %v2333, 1.442695
        %v2364 = vpow.pop %v2363
        %v2365 = vmul.f32 %v2334, 1.442695
        %v2366 = vpow.pop %v2365
        %v2367 = vsub.f32 1.0, %v2336
        %v2368 = vsub.f32 1.0, %v2338
        %v2369 = vsub.f32 1.0, %v2340
        %v2370 = vsub.f32 1.0, %v2342
        %v2371 = vsub.f32 1.0, %v2344
        %v2372 = vsub.f32 1.0, %v2346
        %v2373 = vsub.f32 1.0, %v2348
        %v2374 = vsub.f32 1.0, %v2350
        %v2375 = vsub.f32 1.0, %v2352
        %v2376 = vsub.f32 1.0, %v2354
        %v2377 = vsub.f32 1.0, %v2356
        %v2378 = vsub.f32 1.0, %v2358
        %v2379 = vsub.f32 1.0, %v2360
        %v2380 = vsub.f32 1.0, %v2362
        %v2381 = vsub.f32 1.0, %v2364
        %v2382 = vsub.f32 1.0, %v2366
        %v2383 = vlaneseq
        %v2384 = vshrl.u32 %v2383, 7
        %v2385 = vsub.s32 0, %v2384
        %v2386 = vrot.slane %v2367, %v2385
        %v2387 = vlaneseq
        %v2388 = vshrl.u32 %v2387, 7
        %v2389 = vsub.s32 0, %v2388
        %v2390 = vrot.slane %v2368, %v2389
        %v2391 = vmul.f32 %v2386, %v1914
        %v2392 = vmul.f32 %v2390, %v1916
        %v2393 = vmul.f32 %v2386, %v1918
        %v2394 = vmul.f32 %v2390, %v1920
        %v2395 = vmul.f32 %v2386, %v1924
        %v2396 = vmul.f32 %v2390, %v1926
        %v2397 = vadd.f32 %v2391, 0.0
        %v2398 = vadd.f32 %v2392, 0.0
        %v2399 = vadd.f32 %v2393, 0.0
        %v2400 = vadd.f32 %v2394, 0.0
        %v2401 = vadd.f32 %v2395, 0.0
        %v2402 = vadd.f32 %v2396, 0.0
        %v2403 = vsub.f32 1.0, %v2367
        %v2404 = vsub.f32 1.0, %v2368
        %v2405 = vmul.f32 %v2403, %v2369
        %v2406 = vmul.f32 %v2404, %v2370
        %v2407 = vlaneseq
        %v2408 = vshrl.u32 %v2407, 7
        %v2409 = vsub.s32 0, %v2408
        %v2410 = vrot.slane %v2405, %v2409
        %v2411 = vlaneseq
        %v2412 = vshrl.u32 %v2411, 7
        %v2413 = vsub.s32 0, %v2412
        %v2414 = vrot.slane %v2406, %v2413
        %v2415 = vmul.f32 %v2410, %v1965
        %v2416 = vmul.f32 %v2414, %v1967
        %v2417 = vmul.f32 %v2410, %v1969
        %v2418 = vmul.f32 %v2414, %v1971
        %v2419 = vmul.f32 %v2410, %v1975
        %v2420 = vmul.f32 %v2414, %v1977
        %v2421 = vadd.f32 %v2397, %v2415
        %v2422 = vadd.f32 %v2398, %v2416
        %v2423 = vadd.f32 %v2399, %v2417
        %v2424 = vadd.f32 %v2400, %v2418
        %v2425 = vadd.f32 %v2401, %v2419
        %v2426 = vadd.f32 %v2402, %v2420
        %v2427 = vsub.f32 1.0, %v2369
        %v2428 = vsub.f32 1.0, %v2370
        %v2429 = vmul.f32 %v2403, %v2427
        %v2430 = vmul.f32 %v2404, %v2428
        %v2431 = vmul.f32 %v2429, %v2371
        %v2432 = vmul.f32 %v2430, %v2372
        %v2433 = vlaneseq
        %v2434 = vshrl.u32 %v2433, 7
        %v2435 = vsub.s32 0, %v2434
        %v2436 = vrot.slane %v2431, %v2435
        %v2437 = vlaneseq
        %v2438 = vshrl.u32 %v2437, 7
        %v2439 = vsub.s32 0, %v2438
        %v2440 = vrot.slane %v2432, %v2439
        %v2441 = vmul.f32 %v2436, %v2016
        %v2442 = vmul.f32 %v2440, %v2018
        %v2443 = vmul.f32 %v2436, %v2020
        %v2444 = vmul.f32 %v2440, %v2022
        %v2445 = vmul.f32 %v2436, %v2026
        %v2446 = vmul.f32 %v2440, %v2028
        %v2447 = vadd.f32 %v2421, %v2441
        %v2448 = vadd.f32 %v2422, %v2442
        %v2449 = vadd.f32 %v2423, %v2443
        %v2450 = vadd.f32 %v2424, %v2444
        %v2451 = vadd.f32 %v2425, %v2445
        %v2452 = vadd.f32 %v2426, %v2446
        %v2453 = vsub.f32 1.0, %v2371
        %v2454 = vsub.f32 1.0, %v2372
        %v2455 = vmul.f32 %v2429, %v2453
        %v2456 = vmul.f32 %v2430, %v2454
        %v2457 = vmul.f32 %v2455, %v2373
        %v2458 = vmul.f32 %v2456, %v2374
        %v2459 = vlaneseq
        %v2460 = vshrl.u32 %v2459, 7
        %v2461 = vsub.s32 0, %v2460
        %v2462 = vrot.slane %v2457, %v2461
        %v2463 = vlaneseq
        %v2464 = vshrl.u32 %v2463, 7
        %v2465 = vsub.s32 0, %v2464
        %v2466 = vrot.slane %v2458, %v2465
        %v2467 = vmul.f32 %v2462, %v2067
        %v2468 = vmul.f32 %v2466, %v2069
        %v2469 = vmul.f32 %v2462, %v2071
        %v2470 = vmul.f32 %v2466, %v2073
        %v2471 = vmul.f32 %v2462, %v2077
        %v2472 = vmul.f32 %v2466, %v2079
        %v2473 = vadd.f32 %v2447, %v2467
        %v2474 = vadd.f32 %v2448, %v2468
        %v2475 = vadd.f32 %v2449, %v2469
        %v2476 = vadd.f32 %v2450, %v2470
        %v2477 = vadd.f32 %v2451, %v2471
        %v2478 = vadd.f32 %v2452, %v2472
        %v2479 = vsub.f32 1.0, %v2373
        %v2480 = vsub.f32 1.0, %v2374
        %v2481 = vmul.f32 %v2455, %v2479
        %v2482 = vmul.f32 %v2456, %v2480
        %v2483 = vmul.f32 %v2481, %v2375
        %v2484 = vmul.f32 %v2482, %v2376
        %v2485 = vlaneseq
        %v2486 = vshrl.u32 %v2485, 7
        %v2487 = vsub.s32 0, %v2486
        %v2488 = vrot.slane %v2483, %v2487
        %v2489 = vlaneseq
        %v2490 = vshrl.u32 %v2489, 7
        %v2491 = vsub.s32 0, %v2490
        %v2492 = vrot.slane %v2484, %v2491
        %v2493 = vmul.f32 %v2488, %v2118
        %v2494 = vmul.f32 %v2492, %v2120
        %v2495 = vmul.f32 %v2488, %v2122
        %v2496 = vmul.f32 %v2492, %v2124
        %v2497 = vmul.f32 %v2488, %v2128
        %v2498 = vmul.f32 %v2492, %v2130
        %v2499 = vadd.f32 %v2473, %v2493
        %v2500 = vadd.f32 %v2474, %v2494
        %v2501 = vadd.f32 %v2475, %v2495
        %v2502 = vadd.f32 %v2476, %v2496
        %v2503 = vadd.f32 %v2477, %v2497
        %v2504 = vadd.f32 %v2478, %v2498
        %v2505 = vsub.f32 1.0, %v2375
        %v2506 = vsub.f32 1.0, %v2376
        %v2507 = vmul.f32 %v2481, %v2505
        %v2508 = vmul.f32 %v2482, %v2506
        %v2509 = vmul.f32 %v2507, %v2377
        %v2510 = vmul.f32 %v2508, %v2378
        %v2511 = vlaneseq
        %v2512 = vshrl.u32 %v2511, 7
        %v2513 = vsub.s32 0, %v2512
        %v2514 = vrot.slane %v2509, %v2513
        %v2515 = vlaneseq
        %v2516 = vshrl.u32 %v2515, 7
        %v2517 = vsub.s32 0, %v2516
        %v2518 = vrot.slane %v2510, %v2517
        %v2519 = vmul.f32 %v2514, %v2169
        %v2520 = vmul.f32 %v2518, %v2171
        %v2521 = vmul.f32 %v2514, %v2173
        %v2522 = vmul.f32 %v2518, %v2175
        %v2523 = vmul.f32 %v2514, %v2179
        %v2524 = vmul.f32 %v2518, %v2181
        %v2525 = vadd.f32 %v2499, %v2519
        %v2526 = vadd.f32 %v2500, %v2520
        %v2527 = vadd.f32 %v2501, %v2521
        %v2528 = vadd.f32 %v2502, %v2522
        %v2529 = vadd.f32 %v2503, %v2523
        %v2530 = vadd.f32 %v2504, %v2524
        %v2531 = vsub.f32 1.0, %v2377
        %v2532 = vsub.f32 1.0, %v2378
        %v2533 = vmul.f32 %v2507, %v2531
        %v2534 = vmul.f32 %v2508, %v2532
        %v2535 = vmul.f32 %v2533, %v2379
        %v2536 = vmul.f32 %v2534, %v2380
        %v2537 = vlaneseq
        %v2538 = vshrl.u32 %v2537, 7
        %v2539 = vsub.s32 0, %v2538
        %v2540 = vrot.slane %v2535, %v2539
        %v2541 = vlaneseq
        %v2542 = vshrl.u32 %v2541, 7
        %v2543 = vsub.s32 0, %v2542
        %v2544 = vrot.slane %v2536, %v2543
        %v2545 = vmul.f32 %v2540, %v2220
        %v2546 = vmul.f32 %v2544, %v2222
        %v2547 = vmul.f32 %v2540, %v2224
        %v2548 = vmul.f32 %v2544, %v2226
        %v2549 = vmul.f32 %v2540, %v2230
        %v2550 = vmul.f32 %v2544, %v2232
        %v2551 = vadd.f32 %v2525, %v2545
        %v2552 = vadd.f32 %v2526, %v2546
        %v2553 = vadd.f32 %v2527, %v2547
        %v2554 = vadd.f32 %v2528, %v2548
        %v2555 = vadd.f32 %v2529, %v2549
        %v2556 = vadd.f32 %v2530, %v2550
        %v2557 = vsub.f32 1.0, %v2379
        %v2558 = vsub.f32 1.0, %v2380
        %v2559 = vmul.f32 %v2533, %v2557
        %v2560 = vmul.f32 %v2534, %v2558
        %v2561 = vmul.f32 %v2559, %v2381
        %v2562 = vmul.f32 %v2560, %v2382
        %v2563 = vlaneseq
        %v2564 = vshrl.u32 %v2563, 7
        %v2565 = vsub.s32 0, %v2564
        %v2566 = vrot.slane %v2561, %v2565
        %v2567 = vlaneseq
        %v2568 = vshrl.u32 %v2567, 7
        %v2569 = vsub.s32 0, %v2568
        %v2570 = vrot.slane %v2562, %v2569
        %v2571 = vmul.f32 %v2566, %v2271
        %v2572 = vmul.f32 %v2570, %v2273
        %v2573 = vmul.f32 %v2566, %v2275
        %v2574 = vmul.f32 %v2570, %v2277
        %v2575 = vmul.f32 %v2566, %v2281
        %v2576 = vmul.f32 %v2570, %v2283
        %v2577 = vadd.f32 %v2551, %v2571
        %v2578 = vadd.f32 %v2552, %v2572
        %v2579 = vadd.f32 %v2553, %v2573
        %v2580 = vadd.f32 %v2554, %v2574
        %v2581 = vadd.f32 %v2555, %v2575
        %v2582 = vadd.f32 %v2556, %v2576
        %v2583 = vld [vmem:[%s7] sm:$0x7]
        %v2584 = vld [vmem:[%s8] sm:$0x7]
        %2586 = vset.pattern.permute.xlu0 0
        %2587 = vperm.xlu0 %2586, %v2584
        %v2588 = vpop.permute.xlu0 %2587
        %vm2590 = vcmask 138240
        %v2592 = vsel %vm2590, %v2583, 0
        %vm2594 = vcmask 1040384
        %v2596 = vsel %vm2594, %v2581, 0
        %v2599 = vsel %vm2594, %v2582, 0
        %2601 = vmatprep.subr.mxu0 %v2578
        %2602 = vmatpush1.msra.mxu0 %v2577
        %2603 = vmatprep.subr.mxu0 %v2580
        %2604 = vmatpush1.msra.mxu0 %v2579
        %2605 = vmatprep.subr.mxu0 %v2599
        %2606 = vmatpush1.msra.mxu0 %v2596
        %2607 = vmatprep.subr.mxu0 0.0
        %2608 = vmatpush1.msra.mxu0 0.0
        %2609 = vmatprep.subr.mxu0 0.0
        %2610 = vmatpush1.msra.mxu0 0.0
        %2611 = vmatprep.subr.mxu0 0.0
        %2612 = vmatpush1.msra.mxu0 0.0
        %2613 = vmatprep.subr.mxu0 0.0
        %2614 = vmatpush1.msra.mxu0 0.0
        %2615 = vmatprep.subr.mxu0 0.0
        %2616 = vmatpush1.msra.mxu0 0.0
        %2617 = vmatprep.subr.mxu0 0.0
        %2618 = vmatpush1.msra.mxu0 0.0
        %2619 = vmatprep.subr.mxu0 0.0
        %2620 = vmatpush1.msra.mxu0 0.0
        %2621 = vmatprep.subr.mxu0 0.0
        %2622 = vmatpush1.msra.mxu0 0.0
        %2623 = vmatprep.subr.mxu0 0.0
        %2624 = vmatpush1.msra.mxu0 0.0
        %2625 = vmatprep.subr.mxu0 0.0
        %2626 = vmatpush1.msra.mxu0 0.0
        %2627 = vmatprep.subr.mxu0 0.0
        %2628 = vmatpush1.msra.mxu0 0.0
        %2629 = vmatprep.subr.mxu0 0.0
        %2630 = vmatpush1.msra.mxu0 0.0
        %2631 = vmatprep.subr.mxu0 0.0
        %2632 = vmatpush1.msra.mxu0 0.0
        %2633 = vmatprep.subr.mxu0 0.0
        %2634 = vmatpush1.msra.mxu0 0.0
        %2635 = vmatprep.subr.mxu0 0.0
        %2636 = vmatpush1.msra.mxu0 0.0
        %2637 = vmatprep.subr.mxu0 0.0
        %2638 = vmatpush1.msra.mxu0 0.0
        %2639 = vmatprep.subr.mxu0 0.0
        %2640 = vmatpush1.msra.mxu0 0.0
        %2641 = vmatprep.subr.mxu0 0.0
        %2642 = vmatpush1.msra.mxu0 0.0
        %2643 = vmatprep.subr.mxu0 0.0
        %2644 = vmatpush1.msra.mxu0 0.0
        %2645 = vmatprep.subr.mxu0 0.0
        %2646 = vmatpush1.msra.mxu0 0.0
        %2647 = vmatprep.subr.mxu0 0.0
        %2648 = vmatpush1.msra.mxu0 0.0
        %2649 = vmatprep.subr.mxu0 0.0
        %2650 = vmatpush1.msra.mxu0 0.0
        %2651 = vmatprep.subr.mxu0 0.0
        %2652 = vmatpush1.msra.mxu0 0.0
        %2653 = vmatprep.subr.mxu0 0.0
        %2654 = vmatpush1.msra.mxu0 0.0
        %2655 = vmatprep.subr.mxu0 0.0
        %2656 = vmatpush1.msra.mxu0 0.0
        %2657 = vmatprep.subr.mxu0 0.0
        %2658 = vmatpush1.msra.mxu0 0.0
        %2659 = vmatprep.subr.mxu0 0.0
        %2660 = vmatpush1.msra.mxu0 0.0
        %2661 = vmatprep.subr.mxu0 0.0
        %2662 = vmatpush1.msra.mxu0 0.0
        %2663 = vmatprep.subr.mxu0 0.0
        %2664 = vmatpush1.msra.mxu0 0.0
        %2665 = vmatprep.mubr.f32.mxu0 0.0
        %2666 = vmatmul.mubr.f32.gmra.mrb[0].mxu0 %v2592
        %v2667 = vpop.f32.mrb[0].mxu0
        %v2668 = vadd.f32 %v2588, %v2667
        %v2669 = vpop.f32.mrb[0].mxu0
        %v2670 = vadd.f32 %v2588, %v2669
        %2671 = vdwg.mxu0
        %v2672 = vxor.u32 %v2668, 2147483648
        %v2673 = vxor.u32 %v2670, 2147483648
        %v2674 = vmul.f32 %v2672, 1.442695
        %v2675 = vpow.pop %v2674
        %v2676 = vmul.f32 %v2673, 1.442695
        %v2677 = vpow.pop %v2676
        %v2678 = vadd.f32 %v2675, 1.0
        %v2679 = vadd.f32 %v2677, 1.0
        %v2680 = vrcp.pop %v2678
        %v2681 = vmul.f32 1.0, %v2680
        %v2682 = vrcp.pop %v2679
        %v2683 = vmul.f32 1.0, %v2682
        %v2686 = vcombine.low %v2681, %v2683
        %2688 = vst [vmem:[%s347] sm:$0x77] %v2686
        %p2689 = scmp.lt.s32.totalorder %s21, 1
        %s2690 = scalar_select %p2689, %s21, 1
        %s2691 = smul.addr %s2690, 2
        %s2692 = smul.addr %s2691, 4
        %s2693 = scalar_lea.vmem %s9, %s2692
        // Predicated region
        $region61: #{tpu_custom_call.1} parent=55 // pred_check
          %p2694 = pneg %p233
        $region62: #{tpu_custom_call.1} parent=55 // pred_check_branch
          %2696 = sbr.rel (%p2694) target = $region64
        $region63: #{tpu_custom_call.1} parent=55 // pred_region
          _
        $region64: #{tpu_custom_call.1} parent=55 // pred_fallthru
          _
      $region56: #{tpu_custom_call.1} parent=5 // pred_fallthru
        _
      %p2697 = scmp.le.s32.totalorder 2, %s16
      // Predicated region
      $region65: #{tpu_custom_call.1} parent=5 // pred_check
        %p2698 = pneg %p2697
      $region66: #{tpu_custom_call.1} parent=5 // pred_check_branch
        %2700 = sbr.rel (%p2698) target = $region68
      $region67: #{tpu_custom_call.1} parent=5 // pred_region
        %s2701 = ssub.s32 %s16, 2
        // Predicated region
        $region69: #{tpu_custom_call.1} parent=67 // pred_check
          %p2702 = pneg %p239
        $region70: #{tpu_custom_call.1} parent=67 // pred_check_branch
          %2704 = sbr.rel (%p2702) target = $region72
        $region71: #{tpu_custom_call.1} parent=67 // pred_region
          %p2705 = scmp.lt.s32.totalorder %s22, 1
          %s2706 = scalar_select %p2705, %s22, 1
          %s2707 = smul.addr %s2706, 2
          %s2708 = smul.addr %s2707, 4
          %s2709 = scalar_lea.vmem %s9, %s2708
        $region72: #{tpu_custom_call.1} parent=67 // pred_fallthru
          _
      $region68: #{tpu_custom_call.1} parent=5 // pred_fallthru
        _
    $region6: #{tpu_custom_call.1} parent=1 // loop_footer
      %s20 = sadd.s32 1, %s16
    $region7: #{tpu_custom_call.1} parent=1 // loop_footer_branch
      %15 = sbr.rel target = $region3
    $region8: #{tpu_custom_call.1} parent=1 // loop_exit
      _
    %2710 = vsyncpa [#allocation3], 1
    %s2711 = scalar_lea.sflag [#allocation3], 1
    %2712 = vsyncpa %s2711, 1

</llo_original>
